<compile_context>
chip_gen: v7x
topology: tpu7x:2x2x1
jax: 0.10.0
libtpu: 0.0.40
codegen_flags: <defaults>
</compile_context>

<pallas_src>
import jax
import jax.numpy as jnp
from jax.experimental import pallas as pl
from jax.experimental.pallas import tpu as pltpu


VMEM = pl.BlockSpec(memory_space=pltpu.MemorySpace.VMEM)


# ---------------------------------------------------------------------------
# Pallas kernels
# ---------------------------------------------------------------------------
def _conv1_pool_relu_kernel(w_ref, b_ref, q0_ref, q1_ref, q2_ref, q3_ref, o_ref):
    """Fused conv1-as-matmul + 2x2 max-pool + bias + ReLU.

    w:(6,75)  b:(6,1)  qX:(75, N*14*14)  ->  o:(6, N*14*14), lane-dense.
    Each qX holds the im2col columns of one 2x2 pool-window position; the max
    over the four raw matmul results equals the max-pool of the conv output,
    and bias/ReLU commute with max, so they are applied once at the end.
    """
    w = w_ref[...]

    def mm(q_ref):
        return jnp.dot(w, q_ref[...], preferred_element_type=jnp.float32)

    m = jnp.maximum(jnp.maximum(mm(q0_ref), mm(q1_ref)),
                    jnp.maximum(mm(q2_ref), mm(q3_ref)))
    o_ref[...] = jnp.maximum(m + b_ref[...], 0.0).astype(o_ref.dtype)


def _conv2_fc_kernel(w2_ref, b2_ref, q0_ref, q1_ref, q2_ref, q3_ref,
                     w1f_ref, b1f_ref, w2f_ref, b2f_ref, w3f_ref, b3f_ref,
                     o_ref, xfc_ref):
    """conv2 (+pool+ReLU) fused with fc1/fc2/fc3; intermediates stay in VMEM.

    w2:(16,150)  qX:(150, 25*N) with columns ordered (spatial, batch).
    xfc scratch:(400, N) holds the flattened conv2 features transposed;
    FC chain runs as (features x batch): z = W @ z + b (native torch layout).
    Output o:(10, N); the wrapper transposes the tiny result to (N, 10).
    """
    n = o_ref.shape[1]
    w2 = w2_ref[...]

    def mm(q_ref):
        return jnp.dot(w2, q_ref[...], preferred_element_type=jnp.float32)

    m = jnp.maximum(jnp.maximum(mm(q0_ref), mm(q1_ref)),
                    jnp.maximum(mm(q2_ref), mm(q3_ref)))
    c2 = jnp.maximum(m + b2_ref[...], 0.0)          # (16, 25*n), cols (s, n)

    # Flatten: row (s*16 + c) of xfc gets conv2[channel c, spatial s, image n].
    # Matches the (s, c)-permuted fc1 weight columns -> no transpose/reshape.
    for s in range(25):
        xfc_ref[pl.ds(s * 16, 16), :] = c2[:, s * n:(s + 1) * n]

    z = jnp.dot(w1f_ref[...], xfc_ref[...],
                preferred_element_type=jnp.float32) + b1f_ref[...]
    z = jnp.maximum(z, 0.0)
    z = jnp.dot(w2f_ref[...], z, preferred_element_type=jnp.float32) + b2f_ref[...]
    z = jnp.maximum(z, 0.0)
    z = jnp.dot(w3f_ref[...], z, preferred_element_type=jnp.float32) + b3f_ref[...]
    o_ref[...] = z.astype(o_ref.dtype)


# ---------------------------------------------------------------------------
# Wrappers
# ---------------------------------------------------------------------------
def conv1_pool_relu(quads, w2d, b_col):
    O = w2d.shape[0]
    Mq = quads[0].shape[1]
    return pl.pallas_call(
        _conv1_pool_relu_kernel,
        out_shape=jax.ShapeDtypeStruct((O, Mq), jnp.float32),
        in_specs=[VMEM] * 6,
        out_specs=VMEM,
    )(w2d, b_col, *quads)


def conv2_fc(quads, params, n):
    return pl.pallas_call(
        _conv2_fc_kernel,
        out_shape=jax.ShapeDtypeStruct((10, n), jnp.float32),
        in_specs=[VMEM] * 12,
        out_specs=VMEM,
        scratch_shapes=[pltpu.VMEM((400, n), jnp.float32)],
    )(params["conv2_w"], params["conv2_b"], *quads,
      params["fc1_w"], params["fc1_b"],
      params["fc2_w"], params["fc2_b"],
      params["fc3_w"], params["fc3_b"])


def _pool_quadrant_im2col(x_cnhw, kh, kw, spatial_major):
    """x:(C,N,H,W) -> 4 arrays (C*kh*kw, N*Ho2*Wo2), one per 2x2 pool quadrant.

    Row order (c, i, j) matches torch weight.reshape(O, -1).  Column order is
    (n, h2, w2) when spatial_major=False, else (h2, w2, n).  Assumes the conv
    output dims are even (true for the 32x32 input this model requires).
    """
    C, N, H, W = x_cnhw.shape
    Ho, Wo = H - kh + 1, W - kw + 1
    Ho2, Wo2 = Ho // 2, Wo // 2
    parts = [x_cnhw[:, :, i:i + Ho, j:j + Wo] for i in range(kh) for j in range(kw)]
    p = jnp.stack(parts, axis=1)                      # (C, kh*kw, N, Ho, Wo)
    quads = []
    for di in range(2):
        for dj in range(2):
            q = p[:, :, :, di::2, dj::2]              # (C, kh*kw, N, Ho2, Wo2)
            if spatial_major:
                q = q.transpose(0, 1, 3, 4, 2)        # (C, kh*kw, Ho2, Wo2, N)
            quads.append(q.reshape(C * kh * kw, N * Ho2 * Wo2))
    return quads, Ho2, Wo2


# ---------------------------------------------------------------------------
# Parameters (deterministic, PyTorch-default-style uniform init, pre-packed)
# ---------------------------------------------------------------------------
def _uniform(key, shape, fan_in):
    bound = 1.0 / jnp.sqrt(jnp.float32(fan_in))
    return jax.random.uniform(key, shape, jnp.float32, -bound, bound)


def init_params(key):
    ks = jax.random.split(key, 10)
    p = {}
    # Conv weights as (O, C*kh*kw); biases as (O, 1) columns.
    p["conv1_w"] = _uniform(ks[0], (6, 3, 5, 5), 3 * 5 * 5).reshape(6, 75)
    p["conv1_b"] = _uniform(ks[1], (6,), 3 * 5 * 5).reshape(6, 1)
    p["conv2_w"] = _uniform(ks[2], (16, 6, 5, 5), 6 * 5 * 5).reshape(16, 150)
    p["conv2_b"] = _uniform(ks[3], (16,), 6 * 5 * 5).reshape(16, 1)
    # FC chain runs transposed (features x batch): weights stay in native torch
    # (out, in) orientation, biases become column vectors.  fc1's columns are
    # permuted from (c, s) to (s, c) so the in-kernel flatten is copy-only.
    w1 = _uniform(ks[4], (120, 16 * 5 * 5), 16 * 5 * 5)
    p["fc1_w"] = w1.reshape(120, 16, 25).transpose(0, 2, 1).reshape(120, 400)
    p["fc1_b"] = _uniform(ks[5], (120,), 16 * 5 * 5).reshape(120, 1)
    p["fc2_w"] = _uniform(ks[6], (84, 120), 120)
    p["fc2_b"] = _uniform(ks[7], (84,), 120).reshape(84, 1)
    p["fc3_w"] = _uniform(ks[8], (10, 84), 84)
    p["fc3_b"] = _uniform(ks[9], (10,), 84).reshape(10, 1)
    return p


# ---------------------------------------------------------------------------
# Forward pass (mirrors Net.forward)
# ---------------------------------------------------------------------------
def net_forward(params, x):
    # x: (N, 3, 32, 32) NCHW float32 (32x32 is forced by the 16*5*5 flatten).
    N = x.shape[0]
    xc = jnp.transpose(x, (1, 0, 2, 3))                      # CNHW

    # conv1 (3->6, k5) + 2x2 maxpool + ReLU : one pallas_call -> (6, N*14*14).
    quads, ho, wo = _pool_quadrant_im2col(xc, 5, 5, spatial_major=False)
    h1 = conv1_pool_relu(quads, params["conv1_w"], params["conv1_b"])
    h1 = h1.reshape(6, N, ho, wo)                            # (6, N, 14, 14)

    # conv2 (6->16, k5) + pool + ReLU + fc1 + fc2 + fc3 : one pallas_call.
    quads, _, _ = _pool_quadrant_im2col(h1, 5, 5, spatial_major=True)
    out_t = conv2_fc(quads, params, N)                       # (10, N)
    return out_t.T                                           # (N, 10)


if __name__ == "__main__":
    key = jax.random.PRNGKey(0)
    k_x, k_p = jax.random.split(key)
    x = jax.random.normal(k_x, (2, 3, 32, 32), dtype=jnp.float32)
    params = init_params(k_p)

    out = jax.jit(net_forward)(params, x)
    out = jax.block_until_ready(out)
    assert out.shape == (2, 10) and out.dtype == jnp.float32
    print("KERNEL_OK")
</pallas_src>

<mosaic_0001>
module attributes {stable_mosaic.version = 11 : i64} {
  func.func @_conv1_pool_relu_kernel(%arg0: memref<6x75xf32, #tpu.memory_space<vmem>>, %arg1: memref<6x1xf32, #tpu.memory_space<vmem>>, %arg2: memref<75x392xf32, #tpu.memory_space<vmem>>, %arg3: memref<75x392xf32, #tpu.memory_space<vmem>>, %arg4: memref<75x392xf32, #tpu.memory_space<vmem>>, %arg5: memref<75x392xf32, #tpu.memory_space<vmem>>, %arg6: memref<6x392xf32, #tpu.memory_space<vmem>>) attributes {dimension_semantics = [], scalar_prefetch = 0 : i64, scratch_operands = 0 : i64, tpu.core_type = #tpu.core_type<tc>} {
    %c0 = arith.constant 0 : index
    %c0_0 = arith.constant 0 : index
    %0 = vector.load %arg0[%c0, %c0_0] : memref<6x75xf32, #tpu.memory_space<vmem>>, vector<6x75xf32>
    %c0_1 = arith.constant 0 : index
    %c0_2 = arith.constant 0 : index
    %1 = vector.load %arg2[%c0_1, %c0_2] : memref<75x392xf32, #tpu.memory_space<vmem>>, vector<75x392xf32>
    %cst = arith.constant dense<0.000000e+00> : vector<6x392xf32>
    %2 = tpu.matmul %0, %1, %cst {dimension_numbers = #tpu.dot_dimension_numbers<[1], [0], [0], [1], [0, 0, 1, 1], [], []>} : vector<6x75xf32>, vector<75x392xf32>, vector<6x392xf32> -> vector<6x392xf32>
    %c0_3 = arith.constant 0 : index
    %c0_4 = arith.constant 0 : index
    %3 = vector.load %arg3[%c0_3, %c0_4] : memref<75x392xf32, #tpu.memory_space<vmem>>, vector<75x392xf32>
    %cst_5 = arith.constant dense<0.000000e+00> : vector<6x392xf32>
    %4 = tpu.matmul %0, %3, %cst_5 {dimension_numbers = #tpu.dot_dimension_numbers<[1], [0], [0], [1], [0, 0, 1, 1], [], []>} : vector<6x75xf32>, vector<75x392xf32>, vector<6x392xf32> -> vector<6x392xf32>
    %5 = arith.maximumf %2, %4 : vector<6x392xf32>
    %c0_6 = arith.constant 0 : index
    %c0_7 = arith.constant 0 : index
    %6 = vector.load %arg4[%c0_6, %c0_7] : memref<75x392xf32, #tpu.memory_space<vmem>>, vector<75x392xf32>
    %cst_8 = arith.constant dense<0.000000e+00> : vector<6x392xf32>
    %7 = tpu.matmul %0, %6, %cst_8 {dimension_numbers = #tpu.dot_dimension_numbers<[1], [0], [0], [1], [0, 0, 1, 1], [], []>} : vector<6x75xf32>, vector<75x392xf32>, vector<6x392xf32> -> vector<6x392xf32>
    %c0_9 = arith.constant 0 : index
    %c0_10 = arith.constant 0 : index
    %8 = vector.load %arg5[%c0_9, %c0_10] : memref<75x392xf32, #tpu.memory_space<vmem>>, vector<75x392xf32>
    %cst_11 = arith.constant dense<0.000000e+00> : vector<6x392xf32>
    %9 = tpu.matmul %0, %8, %cst_11 {dimension_numbers = #tpu.dot_dimension_numbers<[1], [0], [0], [1], [0, 0, 1, 1], [], []>} : vector<6x75xf32>, vector<75x392xf32>, vector<6x392xf32> -> vector<6x392xf32>
    %10 = arith.maximumf %7, %9 : vector<6x392xf32>
    %11 = arith.maximumf %5, %10 : vector<6x392xf32>
    %c0_12 = arith.constant 0 : index
    %c0_13 = arith.constant 0 : index
    %12 = vector.load %arg1[%c0_12, %c0_13] : memref<6x1xf32, #tpu.memory_space<vmem>>, vector<6x1xf32>
    %13 = vector.broadcast %12 : vector<6x1xf32> to vector<6x392xf32>
    %14 = arith.addf %11, %13 : vector<6x392xf32>
    %cst_14 = arith.constant 0.000000e+00 : f32
    %15 = vector.broadcast %cst_14 : f32 to vector<6x392xf32>
    %16 = arith.maximumf %14, %15 : vector<6x392xf32>
    %c0_15 = arith.constant 0 : index
    %c0_16 = arith.constant 0 : index
    %17 = vector.load %arg6[%c0_15, %c0_16] : memref<6x392xf32, #tpu.memory_space<vmem>>, vector<6x392xf32>
    tpu.vector_store %arg6[%c0_15, %c0_16], %16 {strides = array<i32>} : memref<6x392xf32, #tpu.memory_space<vmem>>, vector<6x392xf32>,
    return
  }
}

module attributes {stable_mosaic.version = 11 : i64} {
  func.func @_conv2_fc_kernel(%arg0: memref<16x150xf32, #tpu.memory_space<vmem>>, %arg1: memref<16x1xf32, #tpu.memory_space<vmem>>, %arg2: memref<150x50xf32, #tpu.memory_space<vmem>>, %arg3: memref<150x50xf32, #tpu.memory_space<vmem>>, %arg4: memref<150x50xf32, #tpu.memory_space<vmem>>, %arg5: memref<150x50xf32, #tpu.memory_space<vmem>>, %arg6: memref<120x400xf32, #tpu.memory_space<vmem>>, %arg7: memref<120x1xf32, #tpu.memory_space<vmem>>, %arg8: memref<84x120xf32, #tpu.memory_space<vmem>>, %arg9: memref<84x1xf32, #tpu.memory_space<vmem>>, %arg10: memref<10x84xf32, #tpu.memory_space<vmem>>, %arg11: memref<10x1xf32, #tpu.memory_space<vmem>>, %arg12: memref<10x2xf32, #tpu.memory_space<vmem>>, %arg13: memref<400x2xf32, #tpu.memory_space<vmem>>) attributes {dimension_semantics = [], scalar_prefetch = 0 : i64, scratch_operands = 1 : i64, tpu.core_type = #tpu.core_type<tc>} {
    %c0 = arith.constant 0 : index
    %c0_0 = arith.constant 0 : index
    %0 = vector.load %arg0[%c0, %c0_0] : memref<16x150xf32, #tpu.memory_space<vmem>>, vector<16x150xf32>
    %c0_1 = arith.constant 0 : index
    %c0_2 = arith.constant 0 : index
    %1 = vector.load %arg2[%c0_1, %c0_2] : memref<150x50xf32, #tpu.memory_space<vmem>>, vector<150x50xf32>
    %cst = arith.constant dense<0.000000e+00> : vector<16x50xf32>
    %2 = tpu.matmul %0, %1, %cst {dimension_numbers = #tpu.dot_dimension_numbers<[1], [0], [0], [1], [0, 0, 1, 1], [], []>} : vector<16x150xf32>, vector<150x50xf32>, vector<16x50xf32> -> vector<16x50xf32>
    %c0_3 = arith.constant 0 : index
    %c0_4 = arith.constant 0 : index
    %3 = vector.load %arg3[%c0_3, %c0_4] : memref<150x50xf32, #tpu.memory_space<vmem>>, vector<150x50xf32>
    %cst_5 = arith.constant dense<0.000000e+00> : vector<16x50xf32>
    %4 = tpu.matmul %0, %3, %cst_5 {dimension_numbers = #tpu.dot_dimension_numbers<[1], [0], [0], [1], [0, 0, 1, 1], [], []>} : vector<16x150xf32>, vector<150x50xf32>, vector<16x50xf32> -> vector<16x50xf32>
    %5 = arith.maximumf %2, %4 : vector<16x50xf32>
    %c0_6 = arith.constant 0 : index
    %c0_7 = arith.constant 0 : index
    %6 = vector.load %arg4[%c0_6, %c0_7] : memref<150x50xf32, #tpu.memory_space<vmem>>, vector<150x50xf32>
    %cst_8 = arith.constant dense<0.000000e+00> : vector<16x50xf32>
    %7 = tpu.matmul %0, %6, %cst_8 {dimension_numbers = #tpu.dot_dimension_numbers<[1], [0], [0], [1], [0, 0, 1, 1], [], []>} : vector<16x150xf32>, vector<150x50xf32>, vector<16x50xf32> -> vector<16x50xf32>
    %c0_9 = arith.constant 0 : index
    %c0_10 = arith.constant 0 : index
    %8 = vector.load %arg5[%c0_9, %c0_10] : memref<150x50xf32, #tpu.memory_space<vmem>>, vector<150x50xf32>
    %cst_11 = arith.constant dense<0.000000e+00> : vector<16x50xf32>
    %9 = tpu.matmul %0, %8, %cst_11 {dimension_numbers = #tpu.dot_dimension_numbers<[1], [0], [0], [1], [0, 0, 1, 1], [], []>} : vector<16x150xf32>, vector<150x50xf32>, vector<16x50xf32> -> vector<16x50xf32>
    %10 = arith.maximumf %7, %9 : vector<16x50xf32>
    %11 = arith.maximumf %5, %10 : vector<16x50xf32>
    %c0_12 = arith.constant 0 : index
    %c0_13 = arith.constant 0 : index
    %12 = vector.load %arg1[%c0_12, %c0_13] : memref<16x1xf32, #tpu.memory_space<vmem>>, vector<16x1xf32>
    %13 = vector.broadcast %12 : vector<16x1xf32> to vector<16x50xf32>
    %14 = arith.addf %11, %13 : vector<16x50xf32>
    %cst_14 = arith.constant 0.000000e+00 : f32
    %15 = vector.broadcast %cst_14 : f32 to vector<16x50xf32>
    %16 = arith.maximumf %14, %15 : vector<16x50xf32>
    %17 = vector.extract_strided_slice %16 {offsets = [0, 0], sizes = [16, 2], strides = [1, 1]} : vector<16x50xf32> to vector<16x2xf32>
    %c0_15 = arith.constant 0 : index
    %c0_16 = arith.constant 0 : index
    %18 = vector.load %arg13[%c0_15, %c0_16] : memref<400x2xf32, #tpu.memory_space<vmem>>, vector<16x2xf32>
    tpu.vector_store %arg13[%c0_15, %c0_16], %17 {strides = array<i32>} : memref<400x2xf32, #tpu.memory_space<vmem>>, vector<16x2xf32>,
    %19 = vector.extract_strided_slice %16 {offsets = [0, 2], sizes = [16, 2], strides = [1, 1]} : vector<16x50xf32> to vector<16x2xf32>
    %c16 = arith.constant 16 : index
    %c0_17 = arith.constant 0 : index
    %20 = vector.load %arg13[%c16, %c0_17] : memref<400x2xf32, #tpu.memory_space<vmem>>, vector<16x2xf32>
    tpu.vector_store %arg13[%c16, %c0_17], %19 {strides = array<i32>} : memref<400x2xf32, #tpu.memory_space<vmem>>, vector<16x2xf32>,
    %21 = vector.extract_strided_slice %16 {offsets = [0, 4], sizes = [16, 2], strides = [1, 1]} : vector<16x50xf32> to vector<16x2xf32>
    %c32 = arith.constant 32 : index
    %c0_18 = arith.constant 0 : index
    %22 = vector.load %arg13[%c32, %c0_18] : memref<400x2xf32, #tpu.memory_space<vmem>>, vector<16x2xf32>
    tpu.vector_store %arg13[%c32, %c0_18], %21 {strides = array<i32>} : memref<400x2xf32, #tpu.memory_space<vmem>>, vector<16x2xf32>,
    %23 = vector.extract_strided_slice %16 {offsets = [0, 6], sizes = [16, 2], strides = [1, 1]} : vector<16x50xf32> to vector<16x2xf32>
    %c48 = arith.constant 48 : index
    %c0_19 = arith.constant 0 : index
    %24 = vector.load %arg13[%c48, %c0_19] : memref<400x2xf32, #tpu.memory_space<vmem>>, vector<16x2xf32>
    tpu.vector_store %arg13[%c48, %c0_19], %23 {strides = array<i32>} : memref<400x2xf32, #tpu.memory_space<vmem>>, vector<16x2xf32>,
    %25 = vector.extract_strided_slice %16 {offsets = [0, 8], sizes = [16, 2], strides = [1, 1]} : vector<16x50xf32> to vector<16x2xf32>
    %c64 = arith.constant 64 : index
    %c0_20 = arith.constant 0 : index
    %26 = vector.load %arg13[%c64, %c0_20] : memref<400x2xf32, #tpu.memory_space<vmem>>, vector<16x2xf32>
    tpu.vector_store %arg13[%c64, %c0_20], %25 {strides = array<i32>} : memref<400x2xf32, #tpu.memory_space<vmem>>, vector<16x2xf32>,
    %27 = vector.extract_strided_slice %16 {offsets = [0, 10], sizes = [16, 2], strides = [1, 1]} : vector<16x50xf32> to vector<16x2xf32>
    %c80 = arith.constant 80 : index
    %c0_21 = arith.constant 0 : index
    %28 = vector.load %arg13[%c80, %c0_21] : memref<400x2xf32, #tpu.memory_space<vmem>>, vector<16x2xf32>
    tpu.vector_store %arg13[%c80, %c0_21], %27 {strides = array<i32>} : memref<400x2xf32, #tpu.memory_space<vmem>>, vector<16x2xf32>,
    %29 = vector.extract_strided_slice %16 {offsets = [0, 12], sizes = [16, 2], strides = [1, 1]} : vector<16x50xf32> to vector<16x2xf32>
    %c96 = arith.constant 96 : index
    %c0_22 = arith.constant 0 : index
    %30 = vector.load %arg13[%c96, %c0_22] : memref<400x2xf32, #tpu.memory_space<vmem>>, vector<16x2xf32>
    tpu.vector_store %arg13[%c96, %c0_22], %29 {strides = array<i32>} : memref<400x2xf32, #tpu.memory_space<vmem>>, vector<16x2xf32>,
    %31 = vector.extract_strided_slice %16 {offsets = [0, 14], sizes = [16, 2], strides = [1, 1]} : vector<16x50xf32> to vector<16x2xf32>
    %c112 = arith.constant 112 : index
    %c0_23 = arith.constant 0 : index
    %32 = vector.load %arg13[%c112, %c0_23] : memref<400x2xf32, #tpu.memory_space<vmem>>, vector<16x2xf32>
    tpu.vector_store %arg13[%c112, %c0_23], %31 {strides = array<i32>} : memref<400x2xf32, #tpu.memory_space<vmem>>, vector<16x2xf32>,
    %33 = vector.extract_strided_slice %16 {offsets = [0, 16], sizes = [16, 2], strides = [1, 1]} : vector<16x50xf32> to vector<16x2xf32>
    %c128 = arith.constant 128 : index
    %c0_24 = arith.constant 0 : index
    %34 = vector.load %arg13[%c128, %c0_24] : memref<400x2xf32, #tpu.memory_space<vmem>>, vector<16x2xf32>
    tpu.vector_store %arg13[%c128, %c0_24], %33 {strides = array<i32>} : memref<400x2xf32, #tpu.memory_space<vmem>>, vector<16x2xf32>,
    %35 = vector.extract_strided_slice %16 {offsets = [0, 18], sizes = [16, 2], strides = [1, 1]} : vector<16x50xf32> to vector<16x2xf32>
    %c144 = arith.constant 144 : index
    %c0_25 = arith.constant 0 : index
    %36 = vector.load %arg13[%c144, %c0_25] : memref<400x2xf32, #tpu.memory_space<vmem>>, vector<16x2xf32>
    tpu.vector_store %arg13[%c144, %c0_25], %35 {strides = array<i32>} : memref<400x2xf32, #tpu.memory_space<vmem>>, vector<16x2xf32>,
    %37 = vector.extract_strided_slice %16 {offsets = [0, 20], sizes = [16, 2], strides = [1, 1]} : vector<16x50xf32> to vector<16x2xf32>
    %c160 = arith.constant 160 : index
    %c0_26 = arith.constant 0 : index
    %38 = vector.load %arg13[%c160, %c0_26] : memref<400x2xf32, #tpu.memory_space<vmem>>, vector<16x2xf32>
    tpu.vector_store %arg13[%c160, %c0_26], %37 {strides = array<i32>} : memref<400x2xf32, #tpu.memory_space<vmem>>, vector<16x2xf32>,
    %39 = vector.extract_strided_slice %16 {offsets = [0, 22], sizes = [16, 2], strides = [1, 1]} : vector<16x50xf32> to vector<16x2xf32>
    %c176 = arith.constant 176 : index
    %c0_27 = arith.constant 0 : index
    %40 = vector.load %arg13[%c176, %c0_27] : memref<400x2xf32, #tpu.memory_space<vmem>>, vector<16x2xf32>
    tpu.vector_store %arg13[%c176, %c0_27], %39 {strides = array<i32>} : memref<400x2xf32, #tpu.memory_space<vmem>>, vector<16x2xf32>,
    %41 = vector.extract_strided_slice %16 {offsets = [0, 24], sizes = [16, 2], strides = [1, 1]} : vector<16x50xf32> to vector<16x2xf32>
    %c192 = arith.constant 192 : index
    %c0_28 = arith.constant 0 : index
    %42 = vector.load %arg13[%c192, %c0_28] : memref<400x2xf32, #tpu.memory_space<vmem>>, vector<16x2xf32>
    tpu.vector_store %arg13[%c192, %c0_28], %41 {strides = array<i32>} : memref<400x2xf32, #tpu.memory_space<vmem>>, vector<16x2xf32>,
    %43 = vector.extract_strided_slice %16 {offsets = [0, 26], sizes = [16, 2], strides = [1, 1]} : vector<16x50xf32> to vector<16x2xf32>
    %c208 = arith.constant 208 : index
    %c0_29 = arith.constant 0 : index
    %44 = vector.load %arg13[%c208, %c0_29] : memref<400x2xf32, #tpu.memory_space<vmem>>, vector<16x2xf32>
    tpu.vector_store %arg13[%c208, %c0_29], %43 {strides = array<i32>} : memref<400x2xf32, #tpu.memory_space<vmem>>, vector<16x2xf32>,
    %45 = vector.extract_strided_slice %16 {offsets = [0, 28], sizes = [16, 2], strides = [1, 1]} : vector<16x50xf32> to vector<16x2xf32>
    %c224 = arith.constant 224 : index
    %c0_30 = arith.constant 0 : index
    %46 = vector.load %arg13[%c224, %c0_30] : memref<400x2xf32, #tpu.memory_space<vmem>>, vector<16x2xf32>
    tpu.vector_store %arg13[%c224, %c0_30], %45 {strides = array<i32>} : memref<400x2xf32, #tpu.memory_space<vmem>>, vector<16x2xf32>,
    %47 = vector.extract_strided_slice %16 {offsets = [0, 30], sizes = [16, 2], strides = [1, 1]} : vector<16x50xf32> to vector<16x2xf32>
    %c240 = arith.constant 240 : index
    %c0_31 = arith.constant 0 : index
    %48 = vector.load %arg13[%c240, %c0_31] : memref<400x2xf32, #tpu.memory_space<vmem>>, vector<16x2xf32>
    tpu.vector_store %arg13[%c240, %c0_31], %47 {strides = array<i32>} : memref<400x2xf32, #tpu.memory_space<vmem>>, vector<16x2xf32>,
    %49 = vector.extract_strided_slice %16 {offsets = [0, 32], sizes = [16, 2], strides = [1, 1]} : vector<16x50xf32> to vector<16x2xf32>
    %c256 = arith.constant 256 : index
    %c0_32 = arith.constant 0 : index
    %50 = vector.load %arg13[%c256, %c0_32] : memref<400x2xf32, #tpu.memory_space<vmem>>, vector<16x2xf32>
    tpu.vector_store %arg13[%c256, %c0_32], %49 {strides = array<i32>} : memref<400x2xf32, #tpu.memory_space<vmem>>, vector<16x2xf32>,
    %51 = vector.extract_strided_slice %16 {offsets = [0, 34], sizes = [16, 2], strides = [1, 1]} : vector<16x50xf32> to vector<16x2xf32>
    %c272 = arith.constant 272 : index
    %c0_33 = arith.constant 0 : index
    %52 = vector.load %arg13[%c272, %c0_33] : memref<400x2xf32, #tpu.memory_space<vmem>>, vector<16x2xf32>
    tpu.vector_store %arg13[%c272, %c0_33], %51 {strides = array<i32>} : memref<400x2xf32, #tpu.memory_space<vmem>>, vector<16x2xf32>,
    %53 = vector.extract_strided_slice %16 {offsets = [0, 36], sizes = [16, 2], strides = [1, 1]} : vector<16x50xf32> to vector<16x2xf32>
    %c288 = arith.constant 288 : index
    %c0_34 = arith.constant 0 : index
    %54 = vector.load %arg13[%c288, %c0_34] : memref<400x2xf32, #tpu.memory_space<vmem>>, vector<16x2xf32>
    tpu.vector_store %arg13[%c288, %c0_34], %53 {strides = array<i32>} : memref<400x2xf32, #tpu.memory_space<vmem>>, vector<16x2xf32>,
    %55 = vector.extract_strided_slice %16 {offsets = [0, 38], sizes = [16, 2], strides = [1, 1]} : vector<16x50xf32> to vector<16x2xf32>
    %c304 = arith.constant 304 : index
    %c0_35 = arith.constant 0 : index
    %56 = vector.load %arg13[%c304, %c0_35] : memref<400x2xf32, #tpu.memory_space<vmem>>, vector<16x2xf32>
    tpu.vector_store %arg13[%c304, %c0_35], %55 {strides = array<i32>} : memref<400x2xf32, #tpu.memory_space<vmem>>, vector<16x2xf32>,
    %57 = vector.extract_strided_slice %16 {offsets = [0, 40], sizes = [16, 2], strides = [1, 1]} : vector<16x50xf32> to vector<16x2xf32>
    %c320 = arith.constant 320 : index
    %c0_36 = arith.constant 0 : index
    %58 = vector.load %arg13[%c320, %c0_36] : memref<400x2xf32, #tpu.memory_space<vmem>>, vector<16x2xf32>
    tpu.vector_store %arg13[%c320, %c0_36], %57 {strides = array<i32>} : memref<400x2xf32, #tpu.memory_space<vmem>>, vector<16x2xf32>,
    %59 = vector.extract_strided_slice %16 {offsets = [0, 42], sizes = [16, 2], strides = [1, 1]} : vector<16x50xf32> to vector<16x2xf32>
    %c336 = arith.constant 336 : index
    %c0_37 = arith.constant 0 : index
    %60 = vector.load %arg13[%c336, %c0_37] : memref<400x2xf32, #tpu.memory_space<vmem>>, vector<16x2xf32>
    tpu.vector_store %arg13[%c336, %c0_37], %59 {strides = array<i32>} : memref<400x2xf32, #tpu.memory_space<vmem>>, vector<16x2xf32>,
    %61 = vector.extract_strided_slice %16 {offsets = [0, 44], sizes = [16, 2], strides = [1, 1]} : vector<16x50xf32> to vector<16x2xf32>
    %c352 = arith.constant 352 : index
    %c0_38 = arith.constant 0 : index
    %62 = vector.load %arg13[%c352, %c0_38] : memref<400x2xf32, #tpu.memory_space<vmem>>, vector<16x2xf32>
    tpu.vector_store %arg13[%c352, %c0_38], %61 {strides = array<i32>} : memref<400x2xf32, #tpu.memory_space<vmem>>, vector<16x2xf32>,
    %63 = vector.extract_strided_slice %16 {offsets = [0, 46], sizes = [16, 2], strides = [1, 1]} : vector<16x50xf32> to vector<16x2xf32>
    %c368 = arith.constant 368 : index
    %c0_39 = arith.constant 0 : index
    %64 = vector.load %arg13[%c368, %c0_39] : memref<400x2xf32, #tpu.memory_space<vmem>>, vector<16x2xf32>
    tpu.vector_store %arg13[%c368, %c0_39], %63 {strides = array<i32>} : memref<400x2xf32, #tpu.memory_space<vmem>>, vector<16x2xf32>,
    %65 = vector.extract_strided_slice %16 {offsets = [0, 48], sizes = [16, 2], strides = [1, 1]} : vector<16x50xf32> to vector<16x2xf32>
    %c384 = arith.constant 384 : index
    %c0_40 = arith.constant 0 : index
    %66 = vector.load %arg13[%c384, %c0_40] : memref<400x2xf32, #tpu.memory_space<vmem>>, vector<16x2xf32>
    tpu.vector_store %arg13[%c384, %c0_40], %65 {strides = array<i32>} : memref<400x2xf32, #tpu.memory_space<vmem>>, vector<16x2xf32>,
    %c0_41 = arith.constant 0 : index
    %c0_42 = arith.constant 0 : index
    %67 = vector.load %arg6[%c0_41, %c0_42] : memref<120x400xf32, #tpu.memory_space<vmem>>, vector<120x400xf32>
    %c0_43 = arith.constant 0 : index
    %c0_44 = arith.constant 0 : index
    %68 = vector.load %arg13[%c0_43, %c0_44] : memref<400x2xf32, #tpu.memory_space<vmem>>, vector<400x2xf32>
    %cst_45 = arith.constant dense<0.000000e+00> : vector<120x2xf32>
    %69 = tpu.matmul %67, %68, %cst_45 {dimension_numbers = #tpu.dot_dimension_numbers<[1], [0], [0], [1], [0, 0, 1, 1], [], []>} : vector<120x400xf32>, vector<400x2xf32>, vector<120x2xf32> -> vector<120x2xf32>
    %c0_46 = arith.constant 0 : index
    %c0_47 = arith.constant 0 : index
    %70 = vector.load %arg7[%c0_46, %c0_47] : memref<120x1xf32, #tpu.memory_space<vmem>>, vector<120x1xf32>
    %71 = vector.broadcast %70 : vector<120x1xf32> to vector<120x2xf32>
    %72 = arith.addf %69, %71 : vector<120x2xf32>
    %cst_48 = arith.constant 0.000000e+00 : f32
    %73 = vector.broadcast %cst_48 : f32 to vector<120x2xf32>
    %74 = arith.maximumf %72, %73 : vector<120x2xf32>
    %c0_49 = arith.constant 0 : index
    %c0_50 = arith.constant 0 : index
    %75 = vector.load %arg8[%c0_49, %c0_50] : memref<84x120xf32, #tpu.memory_space<vmem>>, vector<84x120xf32>
    %cst_51 = arith.constant dense<0.000000e+00> : vector<84x2xf32>
    %76 = tpu.matmul %75, %74, %cst_51 {dimension_numbers = #tpu.dot_dimension_numbers<[1], [0], [0], [1], [0, 0, 1, 1], [], []>} : vector<84x120xf32>, vector<120x2xf32>, vector<84x2xf32> -> vector<84x2xf32>
    %c0_52 = arith.constant 0 : index
    %c0_53 = arith.constant 0 : index
    %77 = vector.load %arg9[%c0_52, %c0_53] : memref<84x1xf32, #tpu.memory_space<vmem>>, vector<84x1xf32>
    %78 = vector.broadcast %77 : vector<84x1xf32> to vector<84x2xf32>
    %79 = arith.addf %76, %78 : vector<84x2xf32>
    %cst_54 = arith.constant 0.000000e+00 : f32
    %80 = vector.broadcast %cst_54 : f32 to vector<84x2xf32>
    %81 = arith.maximumf %79, %80 : vector<84x2xf32>
    %c0_55 = arith.constant 0 : index
    %c0_56 = arith.constant 0 : index
    %82 = vector.load %arg10[%c0_55, %c0_56] : memref<10x84xf32, #tpu.memory_space<vmem>>, vector<10x84xf32>
    %cst_57 = arith.constant dense<0.000000e+00> : vector<10x2xf32>
    %83 = tpu.matmul %82, %81, %cst_57 {dimension_numbers = #tpu.dot_dimension_numbers<[1], [0], [0], [1], [0, 0, 1, 1], [], []>} : vector<10x84xf32>, vector<84x2xf32>, vector<10x2xf32> -> vector<10x2xf32>
    %c0_58 = arith.constant 0 : index
    %c0_59 = arith.constant 0 : index
    %84 = vector.load %arg11[%c0_58, %c0_59] : memref<10x1xf32, #tpu.memory_space<vmem>>, vector<10x1xf32>
    %85 = vector.broadcast %84 : vector<10x1xf32> to vector<10x2xf32>
    %86 = arith.addf %83, %85 : vector<10x2xf32>
    %c0_60 = arith.constant 0 : index
    %c0_61 = arith.constant 0 : index
    %87 = vector.load %arg12[%c0_60, %c0_61] : memref<10x2xf32, #tpu.memory_space<vmem>>, vector<10x2xf32>
    tpu.vector_store %arg12[%c0_60, %c0_61], %86 {strides = array<i32>} : memref<10x2xf32, #tpu.memory_space<vmem>>, vector<10x2xf32>,
    return
  }
}

</mosaic_0001>

<llo_original>
// kernel: net_forward.2
$region0: #{net_forward.2}
  #allocation0 [shape = 'u32[]', space=smem, size = 0x4, offset = 0x4, fixed_abs, tag = 'smem constant byte address 0x4 - core index']
  #allocation1 [shape = 'u32[144,128]{1,0:T(1,128)}', space=vmem, size = 0x12000, scoped, tag = 'internal scratch']
  %s0 = inlined_call_operand.vmem [shape: f32[6,75], index: 0, kind: input, shape index: {}]
  %s1 = inlined_call_operand.vmem [shape: f32[6,1], index: 1, kind: input, shape index: {}]
  %s2 = inlined_call_operand.vmem [shape: f32[75,392], index: 2, kind: input, shape index: {}]
  %s3 = inlined_call_operand.vmem [shape: f32[75,392], index: 3, kind: input, shape index: {}]
  %s4 = inlined_call_operand.vmem [shape: f32[75,392], index: 4, kind: input, shape index: {}]
  %s5 = inlined_call_operand.vmem [shape: f32[75,392], index: 5, kind: input, shape index: {}]
  %s6 = inlined_call_operand.vmem [shape: f32[6,392], index: 6, kind: output, shape index: {}]
  %s7 = sld [smem:[#allocation0]]
  $region34: #{net_forward.2} parent=0
    _
  %s9 = ssub.s32 1, %s7
  %s10 = scalar_select 0, %s9, %s7
  // Predicated region
  $region2: #{net_forward.2} parent=0 // pred_check
    _
  $region3: #{net_forward.2} parent=0 // pred_check_branch
    %12 = sbr.rel (0) target = $region5
  $region4: #{net_forward.2} parent=0 // pred_region
    _
  $region5: #{net_forward.2} parent=0 // pred_fallthru
    _
  // Predicated region
  $region6: #{net_forward.2} parent=0 // pred_check
    _
  $region7: #{net_forward.2} parent=0 // pred_check_branch
    %14 = sbr.rel (0) target = $region9
  $region8: #{net_forward.2} parent=0 // pred_region
    _
  $region9: #{net_forward.2} parent=0 // pred_fallthru
    _
  // Predicated region
  $region10: #{net_forward.2} parent=0 // pred_check
    _
  $region11: #{net_forward.2} parent=0 // pred_check_branch
    %16 = sbr.rel (0) target = $region13
  $region12: #{net_forward.2} parent=0 // pred_region
    _
  $region13: #{net_forward.2} parent=0 // pred_fallthru
    _
  // Predicated region
  $region14: #{net_forward.2} parent=0 // pred_check
    _
  $region15: #{net_forward.2} parent=0 // pred_check_branch
    %18 = sbr.rel (0) target = $region17
  $region16: #{net_forward.2} parent=0 // pred_region
    _
  $region17: #{net_forward.2} parent=0 // pred_fallthru
    _
  // Predicated region
  $region18: #{net_forward.2} parent=0 // pred_check
    _
  $region19: #{net_forward.2} parent=0 // pred_check_branch
    %20 = sbr.rel (0) target = $region21
  $region20: #{net_forward.2} parent=0 // pred_region
    _
  $region21: #{net_forward.2} parent=0 // pred_fallthru
    _
  // Predicated region
  $region22: #{net_forward.2} parent=0 // pred_check
    _
  $region23: #{net_forward.2} parent=0 // pred_check_branch
    %22 = sbr.rel (0) target = $region25
  $region24: #{net_forward.2} parent=0 // pred_region
    _
  $region25: #{net_forward.2} parent=0 // pred_fallthru
    _
  %v23 = vld [vmem:[%s0] sm:$0x3f]
  %v24 = vld [vmem:[%s2] sm:$0xff]
  %v25 = vld [vmem:[%s2 + $0x8] sm:$0xff]
  %v26 = vld [vmem:[%s2 + $0x10] sm:$0xff]
  %v27 = vld [vmem:[%s2 + $0x18] sm:$0xff]
  %v28 = vld [vmem:[%s2 + $0x20] sm:$0xff]
  %v29 = vld [vmem:[%s2 + $0x28] sm:$0xff]
  %v30 = vld [vmem:[%s2 + $0x30] sm:$0xff]
  %v31 = vld [vmem:[%s2 + $0x38] sm:$0xff]
  %v32 = vld [vmem:[%s2 + $0x40] sm:$0xff]
  %v33 = vld [vmem:[%s2 + $0x48] sm:$0xff]
  %v34 = vld [vmem:[%s2 + $0x50] sm:$0xff]
  %v35 = vld [vmem:[%s2 + $0x58] sm:$0xff]
  %v36 = vld [vmem:[%s2 + $0x60] sm:$0xff]
  %v37 = vld [vmem:[%s2 + $0x68] sm:$0xff]
  %v38 = vld [vmem:[%s2 + $0x70] sm:$0xff]
  %v39 = vld [vmem:[%s2 + $0x78] sm:$0xff]
  %v40 = vld [vmem:[%s2 + $0x80] sm:$0xff]
  %v41 = vld [vmem:[%s2 + $0x88] sm:$0xff]
  %v42 = vld [vmem:[%s2 + $0x90] sm:$0xff]
  %v43 = vld [vmem:[%s2 + $0x98] sm:$0xff]
  %v44 = vld [vmem:[%s2 + $0xa0] sm:$0xff]
  %v45 = vld [vmem:[%s2 + $0xa8] sm:$0xff]
  %v46 = vld [vmem:[%s2 + $0xb0] sm:$0xff]
  %v47 = vld [vmem:[%s2 + $0xb8] sm:$0xff]
  %v48 = vld [vmem:[%s2 + $0xc0] sm:$0xff]
  %v49 = vld [vmem:[%s2 + $0xc8] sm:$0xff]
  %v50 = vld [vmem:[%s2 + $0xd0] sm:$0xff]
  %v51 = vld [vmem:[%s2 + $0xd8] sm:$0xff]
  %v52 = vld [vmem:[%s2 + $0xe0] sm:$0xff]
  %v53 = vld [vmem:[%s2 + $0xe8] sm:$0xff]
  %v54 = vld [vmem:[%s2 + $0xf0] sm:$0xff]
  %v55 = vld [vmem:[%s2 + $0xf8] sm:$0xff]
  %v56 = vld [vmem:[%s2 + $0x100] sm:$0xff]
  %v57 = vld [vmem:[%s2 + $0x108] sm:$0xff]
  %v58 = vld [vmem:[%s2 + $0x110] sm:$0xff]
  %v59 = vld [vmem:[%s2 + $0x118] sm:$0xff]
  %v60 = vld [vmem:[%s2 + $0x120] sm:$0x7]
  %v61 = vld [vmem:[%s2 + $0x128] sm:$0x7]
  %v62 = vld [vmem:[%s2 + $0x130] sm:$0x7]
  %v63 = vld [vmem:[%s2 + $0x138] sm:$0x7]
  %vm64 = vcmask 613376
  %v66 = vsel %vm64, %v23, 0
  %vm68 = vcmask 1042432
  %v70 = vsel %vm68, %v60, 0
  %v73 = vsel %vm68, %v61, 0
  %v76 = vsel %vm68, %v62, 0
  %v79 = vsel %vm68, %v63, 0
  %81 = vmatprep.subr.mxu0 %v25
  %82 = vmatpush1.msra.mxu0 %v24
  %83 = vmatprep.subr.mxu0 %v29
  %84 = vmatpush1.msra.mxu0 %v28
  %85 = vmatprep.subr.mxu0 %v33
  %86 = vmatpush1.msra.mxu0 %v32
  %87 = vmatprep.subr.mxu0 %v37
  %88 = vmatpush1.msra.mxu0 %v36
  %89 = vmatprep.subr.mxu0 %v41
  %90 = vmatpush1.msra.mxu0 %v40
  %91 = vmatprep.subr.mxu0 %v45
  %92 = vmatpush1.msra.mxu0 %v44
  %93 = vmatprep.subr.mxu0 %v49
  %94 = vmatpush1.msra.mxu0 %v48
  %95 = vmatprep.subr.mxu0 %v53
  %96 = vmatpush1.msra.mxu0 %v52
  %97 = vmatprep.subr.mxu0 %v57
  %98 = vmatpush1.msra.mxu0 %v56
  %99 = vmatprep.subr.mxu0 %v73
  %100 = vmatpush1.msra.mxu0 %v70
  %101 = vmatprep.subr.mxu0 0.0
  %102 = vmatpush1.msra.mxu0 0.0
  %103 = vmatprep.subr.mxu0 0.0
  %104 = vmatpush1.msra.mxu0 0.0
  %105 = vmatprep.subr.mxu0 0.0
  %106 = vmatpush1.msra.mxu0 0.0
  %107 = vmatprep.subr.mxu0 0.0
  %108 = vmatpush1.msra.mxu0 0.0
  %109 = vmatprep.subr.mxu0 0.0
  %110 = vmatpush1.msra.mxu0 0.0
  %111 = vmatprep.subr.mxu0 0.0
  %112 = vmatpush1.msra.mxu0 0.0
  %113 = vmatprep.subr.mxu0 0.0
  %114 = vmatpush1.msra.mxu0 0.0
  %115 = vmatprep.subr.mxu0 0.0
  %116 = vmatpush1.msra.mxu0 0.0
  %117 = vmatprep.subr.mxu0 0.0
  %118 = vmatpush1.msra.mxu0 0.0
  %119 = vmatprep.subr.mxu0 0.0
  %120 = vmatpush1.msra.mxu0 0.0
  %121 = vmatprep.subr.mxu0 0.0
  %122 = vmatpush1.msra.mxu0 0.0
  %123 = vmatprep.subr.mxu0 0.0
  %124 = vmatpush1.msra.mxu0 0.0
  %125 = vmatprep.subr.mxu0 0.0
  %126 = vmatpush1.msra.mxu0 0.0
  %127 = vmatprep.subr.mxu0 0.0
  %128 = vmatpush1.msra.mxu0 0.0
  %129 = vmatprep.subr.mxu0 0.0
  %130 = vmatpush1.msra.mxu0 0.0
  %131 = vmatprep.subr.mxu0 0.0
  %132 = vmatpush1.msra.mxu0 0.0
  %133 = vmatprep.subr.mxu0 0.0
  %134 = vmatpush1.msra.mxu0 0.0
  %135 = vmatprep.subr.mxu0 0.0
  %136 = vmatpush1.msra.mxu0 0.0
  %137 = vmatprep.subr.mxu0 0.0
  %138 = vmatpush1.msra.mxu0 0.0
  %139 = vmatprep.subr.mxu0 0.0
  %140 = vmatpush1.msra.mxu0 0.0
  %141 = vmatprep.subr.mxu0 0.0
  %142 = vmatpush1.msra.mxu0 0.0
  %143 = vmatprep.subr.mxu0 0.0
  %144 = vmatpush1.msra.mxu0 0.0
  %145 = vmatprep.mubr.f32.mxu0 0.0
  %146 = vmatmul.mubr.f32.gmra.mrb[0].mxu0 %v66
  %v147 = vpop.f32.mrb[0].mxu0
  %v148 = vadd.f32 0.0, %v147
  %v149 = vpop.f32.mrb[0].mxu0
  %v150 = vadd.f32 0.0, %v149
  %151 = vdwg.mxu0
  %152 = vmatprep.subr.mxu0 %v27
  %153 = vmatpush1.msra.mxu0 %v26
  %154 = vmatprep.subr.mxu0 %v31
  %155 = vmatpush1.msra.mxu0 %v30
  %156 = vmatprep.subr.mxu0 %v35
  %157 = vmatpush1.msra.mxu0 %v34
  %158 = vmatprep.subr.mxu0 %v39
  %159 = vmatpush1.msra.mxu0 %v38
  %160 = vmatprep.subr.mxu0 %v43
  %161 = vmatpush1.msra.mxu0 %v42
  %162 = vmatprep.subr.mxu0 %v47
  %163 = vmatpush1.msra.mxu0 %v46
  %164 = vmatprep.subr.mxu0 %v51
  %165 = vmatpush1.msra.mxu0 %v50
  %166 = vmatprep.subr.mxu0 %v55
  %167 = vmatpush1.msra.mxu0 %v54
  %168 = vmatprep.subr.mxu0 %v59
  %169 = vmatpush1.msra.mxu0 %v58
  %170 = vmatprep.subr.mxu0 %v79
  %171 = vmatpush1.msra.mxu0 %v76
  %172 = vmatprep.subr.mxu0 0.0
  %173 = vmatpush1.msra.mxu0 0.0
  %174 = vmatprep.subr.mxu0 0.0
  %175 = vmatpush1.msra.mxu0 0.0
  %176 = vmatprep.subr.mxu0 0.0
  %177 = vmatpush1.msra.mxu0 0.0
  %178 = vmatprep.subr.mxu0 0.0
  %179 = vmatpush1.msra.mxu0 0.0
  %180 = vmatprep.subr.mxu0 0.0
  %181 = vmatpush1.msra.mxu0 0.0
  %182 = vmatprep.subr.mxu0 0.0
  %183 = vmatpush1.msra.mxu0 0.0
  %184 = vmatprep.subr.mxu0 0.0
  %185 = vmatpush1.msra.mxu0 0.0
  %186 = vmatprep.subr.mxu0 0.0
  %187 = vmatpush1.msra.mxu0 0.0
  %188 = vmatprep.subr.mxu0 0.0
  %189 = vmatpush1.msra.mxu0 0.0
  %190 = vmatprep.subr.mxu0 0.0
  %191 = vmatpush1.msra.mxu0 0.0
  %192 = vmatprep.subr.mxu0 0.0
  %193 = vmatpush1.msra.mxu0 0.0
  %194 = vmatprep.subr.mxu0 0.0
  %195 = vmatpush1.msra.mxu0 0.0
  %196 = vmatprep.subr.mxu0 0.0
  %197 = vmatpush1.msra.mxu0 0.0
  %198 = vmatprep.subr.mxu0 0.0
  %199 = vmatpush1.msra.mxu0 0.0
  %200 = vmatprep.subr.mxu0 0.0
  %201 = vmatpush1.msra.mxu0 0.0
  %202 = vmatprep.subr.mxu0 0.0
  %203 = vmatpush1.msra.mxu0 0.0
  %204 = vmatprep.subr.mxu0 0.0
  %205 = vmatpush1.msra.mxu0 0.0
  %206 = vmatprep.subr.mxu0 0.0
  %207 = vmatpush1.msra.mxu0 0.0
  %208 = vmatprep.subr.mxu0 0.0
  %209 = vmatpush1.msra.mxu0 0.0
  %210 = vmatprep.subr.mxu0 0.0
  %211 = vmatpush1.msra.mxu0 0.0
  %212 = vmatprep.subr.mxu0 0.0
  %213 = vmatpush1.msra.mxu0 0.0
  %214 = vmatprep.subr.mxu0 0.0
  %215 = vmatpush1.msra.mxu0 0.0
  %216 = vmatprep.mubr.f32.mxu0 0.0
  %217 = vmatmul.mubr.f32.gmra.mrb[0].mxu0 %v66
  %v218 = vpop.f32.mrb[0].mxu0
  %v219 = vadd.f32 0.0, %v218
  %v220 = vpop.f32.mrb[0].mxu0
  %v221 = vadd.f32 0.0, %v220
  %222 = vdwg.mxu0
  %v223 = vld [vmem:[%s3] sm:$0xff]
  %v224 = vld [vmem:[%s3 + $0x8] sm:$0xff]
  %v225 = vld [vmem:[%s3 + $0x10] sm:$0xff]
  %v226 = vld [vmem:[%s3 + $0x18] sm:$0xff]
  %v227 = vld [vmem:[%s3 + $0x20] sm:$0xff]
  %v228 = vld [vmem:[%s3 + $0x28] sm:$0xff]
  %v229 = vld [vmem:[%s3 + $0x30] sm:$0xff]
  %v230 = vld [vmem:[%s3 + $0x38] sm:$0xff]
  %v231 = vld [vmem:[%s3 + $0x40] sm:$0xff]
  %v232 = vld [vmem:[%s3 + $0x48] sm:$0xff]
  %v233 = vld [vmem:[%s3 + $0x50] sm:$0xff]
  %v234 = vld [vmem:[%s3 + $0x58] sm:$0xff]
  %v235 = vld [vmem:[%s3 + $0x60] sm:$0xff]
  %v236 = vld [vmem:[%s3 + $0x68] sm:$0xff]
  %v237 = vld [vmem:[%s3 + $0x70] sm:$0xff]
  %v238 = vld [vmem:[%s3 + $0x78] sm:$0xff]
  %v239 = vld [vmem:[%s3 + $0x80] sm:$0xff]
  %v240 = vld [vmem:[%s3 + $0x88] sm:$0xff]
  %v241 = vld [vmem:[%s3 + $0x90] sm:$0xff]
  %v242 = vld [vmem:[%s3 + $0x98] sm:$0xff]
  %v243 = vld [vmem:[%s3 + $0xa0] sm:$0xff]
  %v244 = vld [vmem:[%s3 + $0xa8] sm:$0xff]
  %v245 = vld [vmem:[%s3 + $0xb0] sm:$0xff]
  %v246 = vld [vmem:[%s3 + $0xb8] sm:$0xff]
  %v247 = vld [vmem:[%s3 + $0xc0] sm:$0xff]
  %v248 = vld [vmem:[%s3 + $0xc8] sm:$0xff]
  %v249 = vld [vmem:[%s3 + $0xd0] sm:$0xff]
  %v250 = vld [vmem:[%s3 + $0xd8] sm:$0xff]
  %v251 = vld [vmem:[%s3 + $0xe0] sm:$0xff]
  %v252 = vld [vmem:[%s3 + $0xe8] sm:$0xff]
  %v253 = vld [vmem:[%s3 + $0xf0] sm:$0xff]
  %v254 = vld [vmem:[%s3 + $0xf8] sm:$0xff]
  %v255 = vld [vmem:[%s3 + $0x100] sm:$0xff]
  %v256 = vld [vmem:[%s3 + $0x108] sm:$0xff]
  %v257 = vld [vmem:[%s3 + $0x110] sm:$0xff]
  %v258 = vld [vmem:[%s3 + $0x118] sm:$0xff]
  %v259 = vld [vmem:[%s3 + $0x120] sm:$0x7]
  %v260 = vld [vmem:[%s3 + $0x128] sm:$0x7]
  %v261 = vld [vmem:[%s3 + $0x130] sm:$0x7]
  %v262 = vld [vmem:[%s3 + $0x138] sm:$0x7]
  %v264 = vsel %vm68, %v259, 0
  %v267 = vsel %vm68, %v260, 0
  %v270 = vsel %vm68, %v261, 0
  %v273 = vsel %vm68, %v262, 0
  %275 = vmatprep.subr.mxu0 %v224
  %276 = vmatpush1.msra.mxu0 %v223
  %277 = vmatprep.subr.mxu0 %v228
  %278 = vmatpush1.msra.mxu0 %v227
  %279 = vmatprep.subr.mxu0 %v232
  %280 = vmatpush1.msra.mxu0 %v231
  %281 = vmatprep.subr.mxu0 %v236
  %282 = vmatpush1.msra.mxu0 %v235
  %283 = vmatprep.subr.mxu0 %v240
  %284 = vmatpush1.msra.mxu0 %v239
  %285 = vmatprep.subr.mxu0 %v244
  %286 = vmatpush1.msra.mxu0 %v243
  %287 = vmatprep.subr.mxu0 %v248
  %288 = vmatpush1.msra.mxu0 %v247
  %289 = vmatprep.subr.mxu0 %v252
  %290 = vmatpush1.msra.mxu0 %v251
  %291 = vmatprep.subr.mxu0 %v256
  %292 = vmatpush1.msra.mxu0 %v255
  %293 = vmatprep.subr.mxu0 %v267
  %294 = vmatpush1.msra.mxu0 %v264
  %295 = vmatprep.subr.mxu0 0.0
  %296 = vmatpush1.msra.mxu0 0.0
  %297 = vmatprep.subr.mxu0 0.0
  %298 = vmatpush1.msra.mxu0 0.0
  %299 = vmatprep.subr.mxu0 0.0
  %300 = vmatpush1.msra.mxu0 0.0
  %301 = vmatprep.subr.mxu0 0.0
  %302 = vmatpush1.msra.mxu0 0.0
  %303 = vmatprep.subr.mxu0 0.0
  %304 = vmatpush1.msra.mxu0 0.0
  %305 = vmatprep.subr.mxu0 0.0
  %306 = vmatpush1.msra.mxu0 0.0
  %307 = vmatprep.subr.mxu0 0.0
  %308 = vmatpush1.msra.mxu0 0.0
  %309 = vmatprep.subr.mxu0 0.0
  %310 = vmatpush1.msra.mxu0 0.0
  %311 = vmatprep.subr.mxu0 0.0
  %312 = vmatpush1.msra.mxu0 0.0
  %313 = vmatprep.subr.mxu0 0.0
  %314 = vmatpush1.msra.mxu0 0.0
  %315 = vmatprep.subr.mxu0 0.0
  %316 = vmatpush1.msra.mxu0 0.0
  %317 = vmatprep.subr.mxu0 0.0
  %318 = vmatpush1.msra.mxu0 0.0
  %319 = vmatprep.subr.mxu0 0.0
  %320 = vmatpush1.msra.mxu0 0.0
  %321 = vmatprep.subr.mxu0 0.0
  %322 = vmatpush1.msra.mxu0 0.0
  %323 = vmatprep.subr.mxu0 0.0
  %324 = vmatpush1.msra.mxu0 0.0
  %325 = vmatprep.subr.mxu0 0.0
  %326 = vmatpush1.msra.mxu0 0.0
  %327 = vmatprep.subr.mxu0 0.0
  %328 = vmatpush1.msra.mxu0 0.0
  %329 = vmatprep.subr.mxu0 0.0
  %330 = vmatpush1.msra.mxu0 0.0
  %331 = vmatprep.subr.mxu0 0.0
  %332 = vmatpush1.msra.mxu0 0.0
  %333 = vmatprep.subr.mxu0 0.0
  %334 = vmatpush1.msra.mxu0 0.0
  %335 = vmatprep.subr.mxu0 0.0
  %336 = vmatpush1.msra.mxu0 0.0
  %337 = vmatprep.subr.mxu0 0.0
  %338 = vmatpush1.msra.mxu0 0.0
  %339 = vmatprep.mubr.f32.mxu0 0.0
  %340 = vmatmul.mubr.f32.gmra.mrb[0].mxu0 %v66
  %v341 = vpop.f32.mrb[0].mxu0
  %v342 = vadd.f32 0.0, %v341
  %v343 = vpop.f32.mrb[0].mxu0
  %v344 = vadd.f32 0.0, %v343
  %345 = vdwg.mxu0
  %346 = vmatprep.subr.mxu0 %v226
  %347 = vmatpush1.msra.mxu0 %v225
  %348 = vmatprep.subr.mxu0 %v230
  %349 = vmatpush1.msra.mxu0 %v229
  %350 = vmatprep.subr.mxu0 %v234
  %351 = vmatpush1.msra.mxu0 %v233
  %352 = vmatprep.subr.mxu0 %v238
  %353 = vmatpush1.msra.mxu0 %v237
  %354 = vmatprep.subr.mxu0 %v242
  %355 = vmatpush1.msra.mxu0 %v241
  %356 = vmatprep.subr.mxu0 %v246
  %357 = vmatpush1.msra.mxu0 %v245
  %358 = vmatprep.subr.mxu0 %v250
  %359 = vmatpush1.msra.mxu0 %v249
  %360 = vmatprep.subr.mxu0 %v254
  %361 = vmatpush1.msra.mxu0 %v253
  %362 = vmatprep.subr.mxu0 %v258
  %363 = vmatpush1.msra.mxu0 %v257
  %364 = vmatprep.subr.mxu0 %v273
  %365 = vmatpush1.msra.mxu0 %v270
  %366 = vmatprep.subr.mxu0 0.0
  %367 = vmatpush1.msra.mxu0 0.0
  %368 = vmatprep.subr.mxu0 0.0
  %369 = vmatpush1.msra.mxu0 0.0
  %370 = vmatprep.subr.mxu0 0.0
  %371 = vmatpush1.msra.mxu0 0.0
  %372 = vmatprep.subr.mxu0 0.0
  %373 = vmatpush1.msra.mxu0 0.0
  %374 = vmatprep.subr.mxu0 0.0
  %375 = vmatpush1.msra.mxu0 0.0
  %376 = vmatprep.subr.mxu0 0.0
  %377 = vmatpush1.msra.mxu0 0.0
  %378 = vmatprep.subr.mxu0 0.0
  %379 = vmatpush1.msra.mxu0 0.0
  %380 = vmatprep.subr.mxu0 0.0
  %381 = vmatpush1.msra.mxu0 0.0
  %382 = vmatprep.subr.mxu0 0.0
  %383 = vmatpush1.msra.mxu0 0.0
  %384 = vmatprep.subr.mxu0 0.0
  %385 = vmatpush1.msra.mxu0 0.0
  %386 = vmatprep.subr.mxu0 0.0
  %387 = vmatpush1.msra.mxu0 0.0
  %388 = vmatprep.subr.mxu0 0.0
  %389 = vmatpush1.msra.mxu0 0.0
  %390 = vmatprep.subr.mxu0 0.0
  %391 = vmatpush1.msra.mxu0 0.0
  %392 = vmatprep.subr.mxu0 0.0
  %393 = vmatpush1.msra.mxu0 0.0
  %394 = vmatprep.subr.mxu0 0.0
  %395 = vmatpush1.msra.mxu0 0.0
  %396 = vmatprep.subr.mxu0 0.0
  %397 = vmatpush1.msra.mxu0 0.0
  %398 = vmatprep.subr.mxu0 0.0
  %399 = vmatpush1.msra.mxu0 0.0
  %400 = vmatprep.subr.mxu0 0.0
  %401 = vmatpush1.msra.mxu0 0.0
  %402 = vmatprep.subr.mxu0 0.0
  %403 = vmatpush1.msra.mxu0 0.0
  %404 = vmatprep.subr.mxu0 0.0
  %405 = vmatpush1.msra.mxu0 0.0
  %406 = vmatprep.subr.mxu0 0.0
  %407 = vmatpush1.msra.mxu0 0.0
  %408 = vmatprep.subr.mxu0 0.0
  %409 = vmatpush1.msra.mxu0 0.0
  %410 = vmatprep.mubr.f32.mxu0 0.0
  %411 = vmatmul.mubr.f32.gmra.mrb[0].mxu0 %v66
  %v412 = vpop.f32.mrb[0].mxu0
  %v413 = vadd.f32 0.0, %v412
  %v414 = vpop.f32.mrb[0].mxu0
  %v415 = vadd.f32 0.0, %v414
  %416 = vdwg.mxu0
  %v417 = vmax.f32 %v148, %v342
  %v418 = vmax.f32 %v150, %v344
  %v419 = vmax.f32 %v219, %v413
  %v420 = vmax.f32 %v221, %v415
  %v421 = vld [vmem:[%s4] sm:$0xff]
  %v422 = vld [vmem:[%s4 + $0x8] sm:$0xff]
  %v423 = vld [vmem:[%s4 + $0x10] sm:$0xff]
  %v424 = vld [vmem:[%s4 + $0x18] sm:$0xff]
  %v425 = vld [vmem:[%s4 + $0x20] sm:$0xff]
  %v426 = vld [vmem:[%s4 + $0x28] sm:$0xff]
  %v427 = vld [vmem:[%s4 + $0x30] sm:$0xff]
  %v428 = vld [vmem:[%s4 + $0x38] sm:$0xff]
  %v429 = vld [vmem:[%s4 + $0x40] sm:$0xff]
  %v430 = vld [vmem:[%s4 + $0x48] sm:$0xff]
  %v431 = vld [vmem:[%s4 + $0x50] sm:$0xff]
  %v432 = vld [vmem:[%s4 + $0x58] sm:$0xff]
  %v433 = vld [vmem:[%s4 + $0x60] sm:$0xff]
  %v434 = vld [vmem:[%s4 + $0x68] sm:$0xff]
  %v435 = vld [vmem:[%s4 + $0x70] sm:$0xff]
  %v436 = vld [vmem:[%s4 + $0x78] sm:$0xff]
  %v437 = vld [vmem:[%s4 + $0x80] sm:$0xff]
  %v438 = vld [vmem:[%s4 + $0x88] sm:$0xff]
  %v439 = vld [vmem:[%s4 + $0x90] sm:$0xff]
  %v440 = vld [vmem:[%s4 + $0x98] sm:$0xff]
  %v441 = vld [vmem:[%s4 + $0xa0] sm:$0xff]
  %v442 = vld [vmem:[%s4 + $0xa8] sm:$0xff]
  %v443 = vld [vmem:[%s4 + $0xb0] sm:$0xff]
  %v444 = vld [vmem:[%s4 + $0xb8] sm:$0xff]
  %v445 = vld [vmem:[%s4 + $0xc0] sm:$0xff]
  %v446 = vld [vmem:[%s4 + $0xc8] sm:$0xff]
  %v447 = vld [vmem:[%s4 + $0xd0] sm:$0xff]
  %v448 = vld [vmem:[%s4 + $0xd8] sm:$0xff]
  %v449 = vld [vmem:[%s4 + $0xe0] sm:$0xff]
  %v450 = vld [vmem:[%s4 + $0xe8] sm:$0xff]
  %v451 = vld [vmem:[%s4 + $0xf0] sm:$0xff]
  %v452 = vld [vmem:[%s4 + $0xf8] sm:$0xff]
  %v453 = vld [vmem:[%s4 + $0x100] sm:$0xff]
  %v454 = vld [vmem:[%s4 + $0x108] sm:$0xff]
  %v455 = vld [vmem:[%s4 + $0x110] sm:$0xff]
  %v456 = vld [vmem:[%s4 + $0x118] sm:$0xff]
  %v457 = vld [vmem:[%s4 + $0x120] sm:$0x7]
  %v458 = vld [vmem:[%s4 + $0x128] sm:$0x7]
  %v459 = vld [vmem:[%s4 + $0x130] sm:$0x7]
  %v460 = vld [vmem:[%s4 + $0x138] sm:$0x7]
  %v462 = vsel %vm68, %v457, 0
  %v465 = vsel %vm68, %v458, 0
  %v468 = vsel %vm68, %v459, 0
  %v471 = vsel %vm68, %v460, 0
  %473 = vmatprep.subr.mxu0 %v422
  %474 = vmatpush1.msra.mxu0 %v421
  %475 = vmatprep.subr.mxu0 %v426
  %476 = vmatpush1.msra.mxu0 %v425
  %477 = vmatprep.subr.mxu0 %v430
  %478 = vmatpush1.msra.mxu0 %v429
  %479 = vmatprep.subr.mxu0 %v434
  %480 = vmatpush1.msra.mxu0 %v433
  %481 = vmatprep.subr.mxu0 %v438
  %482 = vmatpush1.msra.mxu0 %v437
  %483 = vmatprep.subr.mxu0 %v442
  %484 = vmatpush1.msra.mxu0 %v441
  %485 = vmatprep.subr.mxu0 %v446
  %486 = vmatpush1.msra.mxu0 %v445
  %487 = vmatprep.subr.mxu0 %v450
  %488 = vmatpush1.msra.mxu0 %v449
  %489 = vmatprep.subr.mxu0 %v454
  %490 = vmatpush1.msra.mxu0 %v453
  %491 = vmatprep.subr.mxu0 %v465
  %492 = vmatpush1.msra.mxu0 %v462
  %493 = vmatprep.subr.mxu0 0.0
  %494 = vmatpush1.msra.mxu0 0.0
  %495 = vmatprep.subr.mxu0 0.0
  %496 = vmatpush1.msra.mxu0 0.0
  %497 = vmatprep.subr.mxu0 0.0
  %498 = vmatpush1.msra.mxu0 0.0
  %499 = vmatprep.subr.mxu0 0.0
  %500 = vmatpush1.msra.mxu0 0.0
  %501 = vmatprep.subr.mxu0 0.0
  %502 = vmatpush1.msra.mxu0 0.0
  %503 = vmatprep.subr.mxu0 0.0
  %504 = vmatpush1.msra.mxu0 0.0
  %505 = vmatprep.subr.mxu0 0.0
  %506 = vmatpush1.msra.mxu0 0.0
  %507 = vmatprep.subr.mxu0 0.0
  %508 = vmatpush1.msra.mxu0 0.0
  %509 = vmatprep.subr.mxu0 0.0
  %510 = vmatpush1.msra.mxu0 0.0
  %511 = vmatprep.subr.mxu0 0.0
  %512 = vmatpush1.msra.mxu0 0.0
  %513 = vmatprep.subr.mxu0 0.0
  %514 = vmatpush1.msra.mxu0 0.0
  %515 = vmatprep.subr.mxu0 0.0
  %516 = vmatpush1.msra.mxu0 0.0
  %517 = vmatprep.subr.mxu0 0.0
  %518 = vmatpush1.msra.mxu0 0.0
  %519 = vmatprep.subr.mxu0 0.0
  %520 = vmatpush1.msra.mxu0 0.0
  %521 = vmatprep.subr.mxu0 0.0
  %522 = vmatpush1.msra.mxu0 0.0
  %523 = vmatprep.subr.mxu0 0.0
  %524 = vmatpush1.msra.mxu0 0.0
  %525 = vmatprep.subr.mxu0 0.0
  %526 = vmatpush1.msra.mxu0 0.0
  %527 = vmatprep.subr.mxu0 0.0
  %528 = vmatpush1.msra.mxu0 0.0
  %529 = vmatprep.subr.mxu0 0.0
  %530 = vmatpush1.msra.mxu0 0.0
  %531 = vmatprep.subr.mxu0 0.0
  %532 = vmatpush1.msra.mxu0 0.0
  %533 = vmatprep.subr.mxu0 0.0
  %534 = vmatpush1.msra.mxu0 0.0
  %535 = vmatprep.subr.mxu0 0.0
  %536 = vmatpush1.msra.mxu0 0.0
  %537 = vmatprep.mubr.f32.mxu0 0.0
  %538 = vmatmul.mubr.f32.gmra.mrb[0].mxu0 %v66
  %v539 = vpop.f32.mrb[0].mxu0
  %v540 = vadd.f32 0.0, %v539
  %v541 = vpop.f32.mrb[0].mxu0
  %v542 = vadd.f32 0.0, %v541
  %543 = vdwg.mxu0
  %544 = vmatprep.subr.mxu0 %v424
  %545 = vmatpush1.msra.mxu0 %v423
  %546 = vmatprep.subr.mxu0 %v428
  %547 = vmatpush1.msra.mxu0 %v427
  %548 = vmatprep.subr.mxu0 %v432
  %549 = vmatpush1.msra.mxu0 %v431
  %550 = vmatprep.subr.mxu0 %v436
  %551 = vmatpush1.msra.mxu0 %v435
  %552 = vmatprep.subr.mxu0 %v440
  %553 = vmatpush1.msra.mxu0 %v439
  %554 = vmatprep.subr.mxu0 %v444
  %555 = vmatpush1.msra.mxu0 %v443
  %556 = vmatprep.subr.mxu0 %v448
  %557 = vmatpush1.msra.mxu0 %v447
  %558 = vmatprep.subr.mxu0 %v452
  %559 = vmatpush1.msra.mxu0 %v451
  %560 = vmatprep.subr.mxu0 %v456
  %561 = vmatpush1.msra.mxu0 %v455
  %562 = vmatprep.subr.mxu0 %v471
  %563 = vmatpush1.msra.mxu0 %v468
  %564 = vmatprep.subr.mxu0 0.0
  %565 = vmatpush1.msra.mxu0 0.0
  %566 = vmatprep.subr.mxu0 0.0
  %567 = vmatpush1.msra.mxu0 0.0
  %568 = vmatprep.subr.mxu0 0.0
  %569 = vmatpush1.msra.mxu0 0.0
  %570 = vmatprep.subr.mxu0 0.0
  %571 = vmatpush1.msra.mxu0 0.0
  %572 = vmatprep.subr.mxu0 0.0
  %573 = vmatpush1.msra.mxu0 0.0
  %574 = vmatprep.subr.mxu0 0.0
  %575 = vmatpush1.msra.mxu0 0.0
  %576 = vmatprep.subr.mxu0 0.0
  %577 = vmatpush1.msra.mxu0 0.0
  %578 = vmatprep.subr.mxu0 0.0
  %579 = vmatpush1.msra.mxu0 0.0
  %580 = vmatprep.subr.mxu0 0.0
  %581 = vmatpush1.msra.mxu0 0.0
  %582 = vmatprep.subr.mxu0 0.0
  %583 = vmatpush1.msra.mxu0 0.0
  %584 = vmatprep.subr.mxu0 0.0
  %585 = vmatpush1.msra.mxu0 0.0
  %586 = vmatprep.subr.mxu0 0.0
  %587 = vmatpush1.msra.mxu0 0.0
  %588 = vmatprep.subr.mxu0 0.0
  %589 = vmatpush1.msra.mxu0 0.0
  %590 = vmatprep.subr.mxu0 0.0
  %591 = vmatpush1.msra.mxu0 0.0
  %592 = vmatprep.subr.mxu0 0.0
  %593 = vmatpush1.msra.mxu0 0.0
  %594 = vmatprep.subr.mxu0 0.0
  %595 = vmatpush1.msra.mxu0 0.0
  %596 = vmatprep.subr.mxu0 0.0
  %597 = vmatpush1.msra.mxu0 0.0
  %598 = vmatprep.subr.mxu0 0.0
  %599 = vmatpush1.msra.mxu0 0.0
  %600 = vmatprep.subr.mxu0 0.0
  %601 = vmatpush1.msra.mxu0 0.0
  %602 = vmatprep.subr.mxu0 0.0
  %603 = vmatpush1.msra.mxu0 0.0
  %604 = vmatprep.subr.mxu0 0.0
  %605 = vmatpush1.msra.mxu0 0.0
  %606 = vmatprep.subr.mxu0 0.0
  %607 = vmatpush1.msra.mxu0 0.0
  %608 = vmatprep.mubr.f32.mxu0 0.0
  %609 = vmatmul.mubr.f32.gmra.mrb[0].mxu0 %v66
  %v610 = vpop.f32.mrb[0].mxu0
  %v611 = vadd.f32 0.0, %v610
  %v612 = vpop.f32.mrb[0].mxu0
  %v613 = vadd.f32 0.0, %v612
  %614 = vdwg.mxu0
  %v615 = vld [vmem:[%s5] sm:$0xff]
  %v616 = vld [vmem:[%s5 + $0x8] sm:$0xff]
  %v617 = vld [vmem:[%s5 + $0x10] sm:$0xff]
  %v618 = vld [vmem:[%s5 + $0x18] sm:$0xff]
  %v619 = vld [vmem:[%s5 + $0x20] sm:$0xff]
  %v620 = vld [vmem:[%s5 + $0x28] sm:$0xff]
  %v621 = vld [vmem:[%s5 + $0x30] sm:$0xff]
  %v622 = vld [vmem:[%s5 + $0x38] sm:$0xff]
  %v623 = vld [vmem:[%s5 + $0x40] sm:$0xff]
  %v624 = vld [vmem:[%s5 + $0x48] sm:$0xff]
  %v625 = vld [vmem:[%s5 + $0x50] sm:$0xff]
  %v626 = vld [vmem:[%s5 + $0x58] sm:$0xff]
  %v627 = vld [vmem:[%s5 + $0x60] sm:$0xff]
  %v628 = vld [vmem:[%s5 + $0x68] sm:$0xff]
  %v629 = vld [vmem:[%s5 + $0x70] sm:$0xff]
  %v630 = vld [vmem:[%s5 + $0x78] sm:$0xff]
  %v631 = vld [vmem:[%s5 + $0x80] sm:$0xff]
  %v632 = vld [vmem:[%s5 + $0x88] sm:$0xff]
  %v633 = vld [vmem:[%s5 + $0x90] sm:$0xff]
  %v634 = vld [vmem:[%s5 + $0x98] sm:$0xff]
  %v635 = vld [vmem:[%s5 + $0xa0] sm:$0xff]
  %v636 = vld [vmem:[%s5 + $0xa8] sm:$0xff]
  %v637 = vld [vmem:[%s5 + $0xb0] sm:$0xff]
  %v638 = vld [vmem:[%s5 + $0xb8] sm:$0xff]
  %v639 = vld [vmem:[%s5 + $0xc0] sm:$0xff]
  %v640 = vld [vmem:[%s5 + $0xc8] sm:$0xff]
  %v641 = vld [vmem:[%s5 + $0xd0] sm:$0xff]
  %v642 = vld [vmem:[%s5 + $0xd8] sm:$0xff]
  %v643 = vld [vmem:[%s5 + $0xe0] sm:$0xff]
  %v644 = vld [vmem:[%s5 + $0xe8] sm:$0xff]
  %v645 = vld [vmem:[%s5 + $0xf0] sm:$0xff]
  %v646 = vld [vmem:[%s5 + $0xf8] sm:$0xff]
  %v647 = vld [vmem:[%s5 + $0x100] sm:$0xff]
  %v648 = vld [vmem:[%s5 + $0x108] sm:$0xff]
  %v649 = vld [vmem:[%s5 + $0x110] sm:$0xff]
  %v650 = vld [vmem:[%s5 + $0x118] sm:$0xff]
  %v651 = vld [vmem:[%s5 + $0x120] sm:$0x7]
  %v652 = vld [vmem:[%s5 + $0x128] sm:$0x7]
  %v653 = vld [vmem:[%s5 + $0x130] sm:$0x7]
  %v654 = vld [vmem:[%s5 + $0x138] sm:$0x7]
  %v656 = vsel %vm68, %v651, 0
  %v659 = vsel %vm68, %v652, 0
  %v662 = vsel %vm68, %v653, 0
  %v665 = vsel %vm68, %v654, 0
  %667 = vmatprep.subr.mxu0 %v616
  %668 = vmatpush1.msra.mxu0 %v615
  %669 = vmatprep.subr.mxu0 %v620
  %670 = vmatpush1.msra.mxu0 %v619
  %671 = vmatprep.subr.mxu0 %v624
  %672 = vmatpush1.msra.mxu0 %v623
  %673 = vmatprep.subr.mxu0 %v628
  %674 = vmatpush1.msra.mxu0 %v627
  %675 = vmatprep.subr.mxu0 %v632
  %676 = vmatpush1.msra.mxu0 %v631
  %677 = vmatprep.subr.mxu0 %v636
  %678 = vmatpush1.msra.mxu0 %v635
  %679 = vmatprep.subr.mxu0 %v640
  %680 = vmatpush1.msra.mxu0 %v639
  %681 = vmatprep.subr.mxu0 %v644
  %682 = vmatpush1.msra.mxu0 %v643
  %683 = vmatprep.subr.mxu0 %v648
  %684 = vmatpush1.msra.mxu0 %v647
  %685 = vmatprep.subr.mxu0 %v659
  %686 = vmatpush1.msra.mxu0 %v656
  %687 = vmatprep.subr.mxu0 0.0
  %688 = vmatpush1.msra.mxu0 0.0
  %689 = vmatprep.subr.mxu0 0.0
  %690 = vmatpush1.msra.mxu0 0.0
  %691 = vmatprep.subr.mxu0 0.0
  %692 = vmatpush1.msra.mxu0 0.0
  %693 = vmatprep.subr.mxu0 0.0
  %694 = vmatpush1.msra.mxu0 0.0
  %695 = vmatprep.subr.mxu0 0.0
  %696 = vmatpush1.msra.mxu0 0.0
  %697 = vmatprep.subr.mxu0 0.0
  %698 = vmatpush1.msra.mxu0 0.0
  %699 = vmatprep.subr.mxu0 0.0
  %700 = vmatpush1.msra.mxu0 0.0
  %701 = vmatprep.subr.mxu0 0.0
  %702 = vmatpush1.msra.mxu0 0.0
  %703 = vmatprep.subr.mxu0 0.0
  %704 = vmatpush1.msra.mxu0 0.0
  %705 = vmatprep.subr.mxu0 0.0
  %706 = vmatpush1.msra.mxu0 0.0
  %707 = vmatprep.subr.mxu0 0.0
  %708 = vmatpush1.msra.mxu0 0.0
  %709 = vmatprep.subr.mxu0 0.0
  %710 = vmatpush1.msra.mxu0 0.0
  %711 = vmatprep.subr.mxu0 0.0
  %712 = vmatpush1.msra.mxu0 0.0
  %713 = vmatprep.subr.mxu0 0.0
  %714 = vmatpush1.msra.mxu0 0.0
  %715 = vmatprep.subr.mxu0 0.0
  %716 = vmatpush1.msra.mxu0 0.0
  %717 = vmatprep.subr.mxu0 0.0
  %718 = vmatpush1.msra.mxu0 0.0
  %719 = vmatprep.subr.mxu0 0.0
  %720 = vmatpush1.msra.mxu0 0.0
  %721 = vmatprep.subr.mxu0 0.0
  %722 = vmatpush1.msra.mxu0 0.0
  %723 = vmatprep.subr.mxu0 0.0
  %724 = vmatpush1.msra.mxu0 0.0
  %725 = vmatprep.subr.mxu0 0.0
  %726 = vmatpush1.msra.mxu0 0.0
  %727 = vmatprep.subr.mxu0 0.0
  %728 = vmatpush1.msra.mxu0 0.0
  %729 = vmatprep.subr.mxu0 0.0
  %730 = vmatpush1.msra.mxu0 0.0
  %731 = vmatprep.mubr.f32.mxu0 0.0
  %732 = vmatmul.mubr.f32.gmra.mrb[0].mxu0 %v66
  %v733 = vpop.f32.mrb[0].mxu0
  %v734 = vadd.f32 0.0, %v733
  %v735 = vpop.f32.mrb[0].mxu0
  %v736 = vadd.f32 0.0, %v735
  %737 = vdwg.mxu0
  %738 = vmatprep.subr.mxu0 %v618
  %739 = vmatpush1.msra.mxu0 %v617
  %740 = vmatprep.subr.mxu0 %v622
  %741 = vmatpush1.msra.mxu0 %v621
  %742 = vmatprep.subr.mxu0 %v626
  %743 = vmatpush1.msra.mxu0 %v625
  %744 = vmatprep.subr.mxu0 %v630
  %745 = vmatpush1.msra.mxu0 %v629
  %746 = vmatprep.subr.mxu0 %v634
  %747 = vmatpush1.msra.mxu0 %v633
  %748 = vmatprep.subr.mxu0 %v638
  %749 = vmatpush1.msra.mxu0 %v637
  %750 = vmatprep.subr.mxu0 %v642
  %751 = vmatpush1.msra.mxu0 %v641
  %752 = vmatprep.subr.mxu0 %v646
  %753 = vmatpush1.msra.mxu0 %v645
  %754 = vmatprep.subr.mxu0 %v650
  %755 = vmatpush1.msra.mxu0 %v649
  %756 = vmatprep.subr.mxu0 %v665
  %757 = vmatpush1.msra.mxu0 %v662
  %758 = vmatprep.subr.mxu0 0.0
  %759 = vmatpush1.msra.mxu0 0.0
  %760 = vmatprep.subr.mxu0 0.0
  %761 = vmatpush1.msra.mxu0 0.0
  %762 = vmatprep.subr.mxu0 0.0
  %763 = vmatpush1.msra.mxu0 0.0
  %764 = vmatprep.subr.mxu0 0.0
  %765 = vmatpush1.msra.mxu0 0.0
  %766 = vmatprep.subr.mxu0 0.0
  %767 = vmatpush1.msra.mxu0 0.0
  %768 = vmatprep.subr.mxu0 0.0
  %769 = vmatpush1.msra.mxu0 0.0
  %770 = vmatprep.subr.mxu0 0.0
  %771 = vmatpush1.msra.mxu0 0.0
  %772 = vmatprep.subr.mxu0 0.0
  %773 = vmatpush1.msra.mxu0 0.0
  %774 = vmatprep.subr.mxu0 0.0
  %775 = vmatpush1.msra.mxu0 0.0
  %776 = vmatprep.subr.mxu0 0.0
  %777 = vmatpush1.msra.mxu0 0.0
  %778 = vmatprep.subr.mxu0 0.0
  %779 = vmatpush1.msra.mxu0 0.0
  %780 = vmatprep.subr.mxu0 0.0
  %781 = vmatpush1.msra.mxu0 0.0
  %782 = vmatprep.subr.mxu0 0.0
  %783 = vmatpush1.msra.mxu0 0.0
  %784 = vmatprep.subr.mxu0 0.0
  %785 = vmatpush1.msra.mxu0 0.0
  %786 = vmatprep.subr.mxu0 0.0
  %787 = vmatpush1.msra.mxu0 0.0
  %788 = vmatprep.subr.mxu0 0.0
  %789 = vmatpush1.msra.mxu0 0.0
  %790 = vmatprep.subr.mxu0 0.0
  %791 = vmatpush1.msra.mxu0 0.0
  %792 = vmatprep.subr.mxu0 0.0
  %793 = vmatpush1.msra.mxu0 0.0
  %794 = vmatprep.subr.mxu0 0.0
  %795 = vmatpush1.msra.mxu0 0.0
  %796 = vmatprep.subr.mxu0 0.0
  %797 = vmatpush1.msra.mxu0 0.0
  %798 = vmatprep.subr.mxu0 0.0
  %799 = vmatpush1.msra.mxu0 0.0
  %800 = vmatprep.subr.mxu0 0.0
  %801 = vmatpush1.msra.mxu0 0.0
  %802 = vmatprep.mubr.f32.mxu0 0.0
  %803 = vmatmul.mubr.f32.gmra.mrb[0].mxu0 %v66
  %v804 = vpop.f32.mrb[0].mxu0
  %v805 = vadd.f32 0.0, %v804
  %v806 = vpop.f32.mrb[0].mxu0
  %v807 = vadd.f32 0.0, %v806
  %808 = vdwg.mxu0
  %v809 = vmax.f32 %v540, %v734
  %v810 = vmax.f32 %v542, %v736
  %v811 = vmax.f32 %v611, %v805
  %v812 = vmax.f32 %v613, %v807
  %v813 = vmax.f32 %v417, %v809
  %v814 = vmax.f32 %v418, %v810
  %v815 = vmax.f32 %v419, %v811
  %v816 = vmax.f32 %v420, %v812
  %v817 = vld [vmem:[%s1] sm:$0x3f]
  %819 = vset.pattern.permute.xlu0 0
  %820 = vperm.xlu0 %819, %v817
  %v821 = vpop.permute.xlu0 %820
  %v823 = vadd.f32 %v813, %v821
  %v824 = vadd.f32 %v814, %v821
  %v825 = vadd.f32 %v815, %v821
  %v826 = vadd.f32 %v816, %v821
  %v827 = vmax.f32 %v823, 0.0
  %v828 = vmax.f32 %v824, 0.0
  %v829 = vmax.f32 %v825, 0.0
  %v830 = vmax.f32 %v826, 0.0
  %831 = vst [vmem:[%s6] sm:$0x3f] %v827
  %832 = vst [vmem:[%s6 + $0x8] sm:$0x3f] %v828
  %833 = vst [vmem:[%s6 + $0x10] sm:$0x3f] %v829
  %vm834 = vcmask 62464
  %835 = vst.msk [vmem:[%s6 + $0x18] sm:$0x3f] %vm834, %v830
  // Predicated region
  $region26: #{net_forward.2} parent=0 // pred_check
    _
  $region27: #{net_forward.2} parent=0 // pred_check_branch
    %837 = sbr.rel (0) target = $region29
  $region28: #{net_forward.2} parent=0 // pred_region
    _
  $region29: #{net_forward.2} parent=0 // pred_fallthru
    _
  // Predicated region
  $region30: #{net_forward.2} parent=0 // pred_check
    _
  $region31: #{net_forward.2} parent=0 // pred_check_branch
    %839 = sbr.rel (0) target = $region33
  $region32: #{net_forward.2} parent=0 // pred_region
    _
  $region33: #{net_forward.2} parent=0 // pred_fallthru
    _

// kernel: net_forward.3
$region0: #{net_forward.3}
  #allocation0 [shape = 'u32[]', space=smem, size = 0x4, offset = 0x4, fixed_abs, tag = 'smem constant byte address 0x4 - core index']
  #allocation1 [shape = 'u32[144,128]{1,0:T(1,128)}', space=vmem, size = 0x12000, scoped, tag = 'internal scratch']
  #allocation2 [shape = 'f32[400,2]{1,0:T(8,128)}', space=vmem, size = 0x32000, scoped, tag = 'scratch operand']
  %s0 = inlined_call_operand.vmem [shape: f32[16,150], index: 0, kind: input, shape index: {}]
  %s1 = inlined_call_operand.vmem [shape: f32[16,1], index: 1, kind: input, shape index: {}]
  %s2 = inlined_call_operand.vmem [shape: f32[150,50], index: 2, kind: input, shape index: {}]
  %s3 = inlined_call_operand.vmem [shape: f32[150,50], index: 3, kind: input, shape index: {}]
  %s4 = inlined_call_operand.vmem [shape: f32[150,50], index: 4, kind: input, shape index: {}]
  %s5 = inlined_call_operand.vmem [shape: f32[150,50], index: 5, kind: input, shape index: {}]
  %s6 = inlined_call_operand.vmem [shape: f32[120,400], index: 6, kind: input, shape index: {}]
  %s7 = inlined_call_operand.vmem [shape: f32[120,1], index: 7, kind: input, shape index: {}]
  %s8 = inlined_call_operand.vmem [shape: f32[84,120], index: 8, kind: input, shape index: {}]
  %s9 = inlined_call_operand.vmem [shape: f32[84,1], index: 9, kind: input, shape index: {}]
  %s10 = inlined_call_operand.vmem [shape: f32[10,84], index: 10, kind: input, shape index: {}]
  %s11 = inlined_call_operand.vmem [shape: f32[10,1], index: 11, kind: input, shape index: {}]
  %s12 = inlined_call_operand.vmem [shape: f32[10,2], index: 12, kind: output, shape index: {}]
  %s13 = sld [smem:[#allocation0]]
  $region58: #{net_forward.3} parent=0
    _
  %s15 = ssub.s32 1, %s13
  %s16 = scalar_select 0, %s15, %s13
  // Predicated region
  $region2: #{net_forward.3} parent=0 // pred_check
    _
  $region3: #{net_forward.3} parent=0 // pred_check_branch
    %18 = sbr.rel (0) target = $region5
  $region4: #{net_forward.3} parent=0 // pred_region
    _
  $region5: #{net_forward.3} parent=0 // pred_fallthru
    _
  // Predicated region
  $region6: #{net_forward.3} parent=0 // pred_check
    _
  $region7: #{net_forward.3} parent=0 // pred_check_branch
    %20 = sbr.rel (0) target = $region9
  $region8: #{net_forward.3} parent=0 // pred_region
    _
  $region9: #{net_forward.3} parent=0 // pred_fallthru
    _
  // Predicated region
  $region10: #{net_forward.3} parent=0 // pred_check
    _
  $region11: #{net_forward.3} parent=0 // pred_check_branch
    %22 = sbr.rel (0) target = $region13
  $region12: #{net_forward.3} parent=0 // pred_region
    _
  $region13: #{net_forward.3} parent=0 // pred_fallthru
    _
  // Predicated region
  $region14: #{net_forward.3} parent=0 // pred_check
    _
  $region15: #{net_forward.3} parent=0 // pred_check_branch
    %24 = sbr.rel (0) target = $region17
  $region16: #{net_forward.3} parent=0 // pred_region
    _
  $region17: #{net_forward.3} parent=0 // pred_fallthru
    _
  // Predicated region
  $region18: #{net_forward.3} parent=0 // pred_check
    _
  $region19: #{net_forward.3} parent=0 // pred_check_branch
    %26 = sbr.rel (0) target = $region21
  $region20: #{net_forward.3} parent=0 // pred_region
    _
  $region21: #{net_forward.3} parent=0 // pred_fallthru
    _
  // Predicated region
  $region22: #{net_forward.3} parent=0 // pred_check
    _
  $region23: #{net_forward.3} parent=0 // pred_check_branch
    %28 = sbr.rel (0) target = $region25
  $region24: #{net_forward.3} parent=0 // pred_region
    _
  $region25: #{net_forward.3} parent=0 // pred_fallthru
    _
  // Predicated region
  $region26: #{net_forward.3} parent=0 // pred_check
    _
  $region27: #{net_forward.3} parent=0 // pred_check_branch
    %30 = sbr.rel (0) target = $region29
  $region28: #{net_forward.3} parent=0 // pred_region
    _
  $region29: #{net_forward.3} parent=0 // pred_fallthru
    _
  // Predicated region
  $region30: #{net_forward.3} parent=0 // pred_check
    _
  $region31: #{net_forward.3} parent=0 // pred_check_branch
    %32 = sbr.rel (0) target = $region33
  $region32: #{net_forward.3} parent=0 // pred_region
    _
  $region33: #{net_forward.3} parent=0 // pred_fallthru
    _
  // Predicated region
  $region34: #{net_forward.3} parent=0 // pred_check
    _
  $region35: #{net_forward.3} parent=0 // pred_check_branch
    %34 = sbr.rel (0) target = $region37
  $region36: #{net_forward.3} parent=0 // pred_region
    _
  $region37: #{net_forward.3} parent=0 // pred_fallthru
    _
  // Predicated region
  $region38: #{net_forward.3} parent=0 // pred_check
    _
  $region39: #{net_forward.3} parent=0 // pred_check_branch
    %36 = sbr.rel (0) target = $region41
  $region40: #{net_forward.3} parent=0 // pred_region
    _
  $region41: #{net_forward.3} parent=0 // pred_fallthru
    _
  // Predicated region
  $region42: #{net_forward.3} parent=0 // pred_check
    _
  $region43: #{net_forward.3} parent=0 // pred_check_branch
    %38 = sbr.rel (0) target = $region45
  $region44: #{net_forward.3} parent=0 // pred_region
    _
  $region45: #{net_forward.3} parent=0 // pred_fallthru
    _
  // Predicated region
  $region46: #{net_forward.3} parent=0 // pred_check
    _
  $region47: #{net_forward.3} parent=0 // pred_check_branch
    %40 = sbr.rel (0) target = $region49
  $region48: #{net_forward.3} parent=0 // pred_region
    _
  $region49: #{net_forward.3} parent=0 // pred_fallthru
    _
  %v41 = vld [vmem:[%s0] sm:$0xff]
  %v42 = vld [vmem:[%s0 + $0x8] sm:$0xff]
  %v43 = vld [vmem:[%s0 + $0x10] sm:$0xff]
  %v44 = vld [vmem:[%s0 + $0x18] sm:$0xff]
  %v45 = vld [vmem:[%s2] sm:$0xff]
  %v46 = vld [vmem:[%s2 + $0x8] sm:$0xff]
  %v47 = vld [vmem:[%s2 + $0x10] sm:$0xff]
  %v48 = vld [vmem:[%s2 + $0x18] sm:$0xff]
  %v49 = vld [vmem:[%s2 + $0x20] sm:$0xff]
  %v50 = vld [vmem:[%s2 + $0x28] sm:$0xff]
  %v51 = vld [vmem:[%s2 + $0x30] sm:$0xff]
  %v52 = vld [vmem:[%s2 + $0x38] sm:$0xff]
  %v53 = vld [vmem:[%s2 + $0x40] sm:$0xff]
  %v54 = vld [vmem:[%s2 + $0x48] sm:$0xff]
  %v55 = vld [vmem:[%s2 + $0x50] sm:$0xff]
  %v56 = vld [vmem:[%s2 + $0x58] sm:$0xff]
  %v57 = vld [vmem:[%s2 + $0x60] sm:$0xff]
  %v58 = vld [vmem:[%s2 + $0x68] sm:$0xff]
  %v59 = vld [vmem:[%s2 + $0x70] sm:$0xff]
  %v60 = vld [vmem:[%s2 + $0x78] sm:$0xff]
  %v61 = vld [vmem:[%s2 + $0x80] sm:$0xff]
  %v62 = vld [vmem:[%s2 + $0x88] sm:$0xff]
  %v63 = vld [vmem:[%s2 + $0x90] sm:$0x3f]
  %vm64 = vcmask 179200
  %v66 = vsel %vm64, %v42, 0
  %v69 = vsel %vm64, %v44, 0
  %vm71 = vcmask 1045504
  %v73 = vsel %vm71, %v63, 0
  %75 = vmatprep.subr.mxu0 0.0
  %76 = vmatpush1.msra.mxu0 %v45
  %77 = vmatprep.subr.mxu0 0.0
  %78 = vmatpush1.msra.mxu0 %v46
  %79 = vmatprep.subr.mxu0 0.0
  %80 = vmatpush1.msra.mxu0 %v47
  %81 = vmatprep.subr.mxu0 0.0
  %82 = vmatpush1.msra.mxu0 %v48
  %83 = vmatprep.subr.mxu0 0.0
  %84 = vmatpush1.msra.mxu0 %v49
  %85 = vmatprep.subr.mxu0 0.0
  %86 = vmatpush1.msra.mxu0 %v50
  %87 = vmatprep.subr.mxu0 0.0
  %88 = vmatpush1.msra.mxu0 %v51
  %89 = vmatprep.subr.mxu0 0.0
  %90 = vmatpush1.msra.mxu0 %v52
  %91 = vmatprep.subr.mxu0 0.0
  %92 = vmatpush1.msra.mxu0 %v53
  %93 = vmatprep.subr.mxu0 0.0
  %94 = vmatpush1.msra.mxu0 %v54
  %95 = vmatprep.subr.mxu0 0.0
  %96 = vmatpush1.msra.mxu0 %v55
  %97 = vmatprep.subr.mxu0 0.0
  %98 = vmatpush1.msra.mxu0 %v56
  %99 = vmatprep.subr.mxu0 0.0
  %100 = vmatpush1.msra.mxu0 %v57
  %101 = vmatprep.subr.mxu0 0.0
  %102 = vmatpush1.msra.mxu0 %v58
  %103 = vmatprep.subr.mxu0 0.0
  %104 = vmatpush1.msra.mxu0 %v59
  %105 = vmatprep.subr.mxu0 0.0
  %106 = vmatpush1.msra.mxu0 %v60
  %107 = vmatprep.subr.mxu0 0.0
  %108 = vmatpush1.msra.mxu0 %v61
  %109 = vmatprep.subr.mxu0 0.0
  %110 = vmatpush1.msra.mxu0 %v62
  %111 = vmatprep.subr.mxu0 0.0
  %112 = vmatpush1.msra.mxu0 %v73
  %113 = vmatprep.subr.mxu0 0.0
  %114 = vmatpush1.msra.mxu0 0.0
  %115 = vmatprep.subr.mxu0 0.0
  %116 = vmatpush1.msra.mxu0 0.0
  %117 = vmatprep.subr.mxu0 0.0
  %118 = vmatpush1.msra.mxu0 0.0
  %119 = vmatprep.subr.mxu0 0.0
  %120 = vmatpush1.msra.mxu0 0.0
  %121 = vmatprep.subr.mxu0 0.0
  %122 = vmatpush1.msra.mxu0 0.0
  %123 = vmatprep.subr.mxu0 0.0
  %124 = vmatpush1.msra.mxu0 0.0
  %125 = vmatprep.subr.mxu0 0.0
  %126 = vmatpush1.msra.mxu0 0.0
  %127 = vmatprep.subr.mxu0 0.0
  %128 = vmatpush1.msra.mxu0 0.0
  %129 = vmatprep.subr.mxu0 0.0
  %130 = vmatpush1.msra.mxu0 0.0
  %131 = vmatprep.subr.mxu0 0.0
  %132 = vmatpush1.msra.mxu0 0.0
  %133 = vmatprep.subr.mxu0 0.0
  %134 = vmatpush1.msra.mxu0 0.0
  %135 = vmatprep.subr.mxu0 0.0
  %136 = vmatpush1.msra.mxu0 0.0
  %137 = vmatprep.subr.mxu0 0.0
  %138 = vmatpush1.msra.mxu0 0.0
  %139 = vmatprep.mubr.f32.mxu0 %v66
  %140 = vmatmul.mubr.f32.gmra.mrb[0].mxu0 %v41
  %v141 = vpop.f32.mrb[0].mxu0
  %v142 = vadd.f32 0.0, %v141
  %v143 = vpop.f32.mrb[0].mxu0
  %144 = vmatprep.mubr.f32.mxu0 %v69
  %145 = vmatmul.mubr.f32.gmra.mrb[0].mxu0 %v43
  %v146 = vpop.f32.mrb[0].mxu0
  %v147 = vadd.f32 0.0, %v146
  %v148 = vpop.f32.mrb[0].mxu0
  %149 = vdwg.mxu0
  %v150 = vld [vmem:[%s3] sm:$0xff]
  %v151 = vld [vmem:[%s3 + $0x8] sm:$0xff]
  %v152 = vld [vmem:[%s3 + $0x10] sm:$0xff]
  %v153 = vld [vmem:[%s3 + $0x18] sm:$0xff]
  %v154 = vld [vmem:[%s3 + $0x20] sm:$0xff]
  %v155 = vld [vmem:[%s3 + $0x28] sm:$0xff]
  %v156 = vld [vmem:[%s3 + $0x30] sm:$0xff]
  %v157 = vld [vmem:[%s3 + $0x38] sm:$0xff]
  %v158 = vld [vmem:[%s3 + $0x40] sm:$0xff]
  %v159 = vld [vmem:[%s3 + $0x48] sm:$0xff]
  %v160 = vld [vmem:[%s3 + $0x50] sm:$0xff]
  %v161 = vld [vmem:[%s3 + $0x58] sm:$0xff]
  %v162 = vld [vmem:[%s3 + $0x60] sm:$0xff]
  %v163 = vld [vmem:[%s3 + $0x68] sm:$0xff]
  %v164 = vld [vmem:[%s3 + $0x70] sm:$0xff]
  %v165 = vld [vmem:[%s3 + $0x78] sm:$0xff]
  %v166 = vld [vmem:[%s3 + $0x80] sm:$0xff]
  %v167 = vld [vmem:[%s3 + $0x88] sm:$0xff]
  %v168 = vld [vmem:[%s3 + $0x90] sm:$0x3f]
  %v170 = vsel %vm71, %v168, 0
  %172 = vmatprep.subr.mxu0 0.0
  %173 = vmatpush1.msra.mxu0 %v150
  %174 = vmatprep.subr.mxu0 0.0
  %175 = vmatpush1.msra.mxu0 %v151
  %176 = vmatprep.subr.mxu0 0.0
  %177 = vmatpush1.msra.mxu0 %v152
  %178 = vmatprep.subr.mxu0 0.0
  %179 = vmatpush1.msra.mxu0 %v153
  %180 = vmatprep.subr.mxu0 0.0
  %181 = vmatpush1.msra.mxu0 %v154
  %182 = vmatprep.subr.mxu0 0.0
  %183 = vmatpush1.msra.mxu0 %v155
  %184 = vmatprep.subr.mxu0 0.0
  %185 = vmatpush1.msra.mxu0 %v156
  %186 = vmatprep.subr.mxu0 0.0
  %187 = vmatpush1.msra.mxu0 %v157
  %188 = vmatprep.subr.mxu0 0.0
  %189 = vmatpush1.msra.mxu0 %v158
  %190 = vmatprep.subr.mxu0 0.0
  %191 = vmatpush1.msra.mxu0 %v159
  %192 = vmatprep.subr.mxu0 0.0
  %193 = vmatpush1.msra.mxu0 %v160
  %194 = vmatprep.subr.mxu0 0.0
  %195 = vmatpush1.msra.mxu0 %v161
  %196 = vmatprep.subr.mxu0 0.0
  %197 = vmatpush1.msra.mxu0 %v162
  %198 = vmatprep.subr.mxu0 0.0
  %199 = vmatpush1.msra.mxu0 %v163
  %200 = vmatprep.subr.mxu0 0.0
  %201 = vmatpush1.msra.mxu0 %v164
  %202 = vmatprep.subr.mxu0 0.0
  %203 = vmatpush1.msra.mxu0 %v165
  %204 = vmatprep.subr.mxu0 0.0
  %205 = vmatpush1.msra.mxu0 %v166
  %206 = vmatprep.subr.mxu0 0.0
  %207 = vmatpush1.msra.mxu0 %v167
  %208 = vmatprep.subr.mxu0 0.0
  %209 = vmatpush1.msra.mxu0 %v170
  %210 = vmatprep.subr.mxu0 0.0
  %211 = vmatpush1.msra.mxu0 0.0
  %212 = vmatprep.subr.mxu0 0.0
  %213 = vmatpush1.msra.mxu0 0.0
  %214 = vmatprep.subr.mxu0 0.0
  %215 = vmatpush1.msra.mxu0 0.0
  %216 = vmatprep.subr.mxu0 0.0
  %217 = vmatpush1.msra.mxu0 0.0
  %218 = vmatprep.subr.mxu0 0.0
  %219 = vmatpush1.msra.mxu0 0.0
  %220 = vmatprep.subr.mxu0 0.0
  %221 = vmatpush1.msra.mxu0 0.0
  %222 = vmatprep.subr.mxu0 0.0
  %223 = vmatpush1.msra.mxu0 0.0
  %224 = vmatprep.subr.mxu0 0.0
  %225 = vmatpush1.msra.mxu0 0.0
  %226 = vmatprep.subr.mxu0 0.0
  %227 = vmatpush1.msra.mxu0 0.0
  %228 = vmatprep.subr.mxu0 0.0
  %229 = vmatpush1.msra.mxu0 0.0
  %230 = vmatprep.subr.mxu0 0.0
  %231 = vmatpush1.msra.mxu0 0.0
  %232 = vmatprep.subr.mxu0 0.0
  %233 = vmatpush1.msra.mxu0 0.0
  %234 = vmatprep.subr.mxu0 0.0
  %235 = vmatpush1.msra.mxu0 0.0
  %236 = vmatprep.mubr.f32.mxu0 %v66
  %237 = vmatmul.mubr.f32.gmra.mrb[0].mxu0 %v41
  %v238 = vpop.f32.mrb[0].mxu0
  %v239 = vadd.f32 0.0, %v238
  %v240 = vpop.f32.mrb[0].mxu0
  %241 = vmatprep.mubr.f32.mxu0 %v69
  %242 = vmatmul.mubr.f32.gmra.mrb[0].mxu0 %v43
  %v243 = vpop.f32.mrb[0].mxu0
  %v244 = vadd.f32 0.0, %v243
  %v245 = vpop.f32.mrb[0].mxu0
  %246 = vdwg.mxu0
  %v247 = vmax.f32 %v142, %v239
  %v248 = vmax.f32 %v147, %v244
  %v249 = vld [vmem:[%s4] sm:$0xff]
  %v250 = vld [vmem:[%s4 + $0x8] sm:$0xff]
  %v251 = vld [vmem:[%s4 + $0x10] sm:$0xff]
  %v252 = vld [vmem:[%s4 + $0x18] sm:$0xff]
  %v253 = vld [vmem:[%s4 + $0x20] sm:$0xff]
  %v254 = vld [vmem:[%s4 + $0x28] sm:$0xff]
  %v255 = vld [vmem:[%s4 + $0x30] sm:$0xff]
  %v256 = vld [vmem:[%s4 + $0x38] sm:$0xff]
  %v257 = vld [vmem:[%s4 + $0x40] sm:$0xff]
  %v258 = vld [vmem:[%s4 + $0x48] sm:$0xff]
  %v259 = vld [vmem:[%s4 + $0x50] sm:$0xff]
  %v260 = vld [vmem:[%s4 + $0x58] sm:$0xff]
  %v261 = vld [vmem:[%s4 + $0x60] sm:$0xff]
  %v262 = vld [vmem:[%s4 + $0x68] sm:$0xff]
  %v263 = vld [vmem:[%s4 + $0x70] sm:$0xff]
  %v264 = vld [vmem:[%s4 + $0x78] sm:$0xff]
  %v265 = vld [vmem:[%s4 + $0x80] sm:$0xff]
  %v266 = vld [vmem:[%s4 + $0x88] sm:$0xff]
  %v267 = vld [vmem:[%s4 + $0x90] sm:$0x3f]
  %v269 = vsel %vm71, %v267, 0
  %271 = vmatprep.subr.mxu0 0.0
  %272 = vmatpush1.msra.mxu0 %v249
  %273 = vmatprep.subr.mxu0 0.0
  %274 = vmatpush1.msra.mxu0 %v250
  %275 = vmatprep.subr.mxu0 0.0
  %276 = vmatpush1.msra.mxu0 %v251
  %277 = vmatprep.subr.mxu0 0.0
  %278 = vmatpush1.msra.mxu0 %v252
  %279 = vmatprep.subr.mxu0 0.0
  %280 = vmatpush1.msra.mxu0 %v253
  %281 = vmatprep.subr.mxu0 0.0
  %282 = vmatpush1.msra.mxu0 %v254
  %283 = vmatprep.subr.mxu0 0.0
  %284 = vmatpush1.msra.mxu0 %v255
  %285 = vmatprep.subr.mxu0 0.0
  %286 = vmatpush1.msra.mxu0 %v256
  %287 = vmatprep.subr.mxu0 0.0
  %288 = vmatpush1.msra.mxu0 %v257
  %289 = vmatprep.subr.mxu0 0.0
  %290 = vmatpush1.msra.mxu0 %v258
  %291 = vmatprep.subr.mxu0 0.0
  %292 = vmatpush1.msra.mxu0 %v259
  %293 = vmatprep.subr.mxu0 0.0
  %294 = vmatpush1.msra.mxu0 %v260
  %295 = vmatprep.subr.mxu0 0.0
  %296 = vmatpush1.msra.mxu0 %v261
  %297 = vmatprep.subr.mxu0 0.0
  %298 = vmatpush1.msra.mxu0 %v262
  %299 = vmatprep.subr.mxu0 0.0
  %300 = vmatpush1.msra.mxu0 %v263
  %301 = vmatprep.subr.mxu0 0.0
  %302 = vmatpush1.msra.mxu0 %v264
  %303 = vmatprep.subr.mxu0 0.0
  %304 = vmatpush1.msra.mxu0 %v265
  %305 = vmatprep.subr.mxu0 0.0
  %306 = vmatpush1.msra.mxu0 %v266
  %307 = vmatprep.subr.mxu0 0.0
  %308 = vmatpush1.msra.mxu0 %v269
  %309 = vmatprep.subr.mxu0 0.0
  %310 = vmatpush1.msra.mxu0 0.0
  %311 = vmatprep.subr.mxu0 0.0
  %312 = vmatpush1.msra.mxu0 0.0
  %313 = vmatprep.subr.mxu0 0.0
  %314 = vmatpush1.msra.mxu0 0.0
  %315 = vmatprep.subr.mxu0 0.0
  %316 = vmatpush1.msra.mxu0 0.0
  %317 = vmatprep.subr.mxu0 0.0
  %318 = vmatpush1.msra.mxu0 0.0
  %319 = vmatprep.subr.mxu0 0.0
  %320 = vmatpush1.msra.mxu0 0.0
  %321 = vmatprep.subr.mxu0 0.0
  %322 = vmatpush1.msra.mxu0 0.0
  %323 = vmatprep.subr.mxu0 0.0
  %324 = vmatpush1.msra.mxu0 0.0
  %325 = vmatprep.subr.mxu0 0.0
  %326 = vmatpush1.msra.mxu0 0.0
  %327 = vmatprep.subr.mxu0 0.0
  %328 = vmatpush1.msra.mxu0 0.0
  %329 = vmatprep.subr.mxu0 0.0
  %330 = vmatpush1.msra.mxu0 0.0
  %331 = vmatprep.subr.mxu0 0.0
  %332 = vmatpush1.msra.mxu0 0.0
  %333 = vmatprep.subr.mxu0 0.0
  %334 = vmatpush1.msra.mxu0 0.0
  %335 = vmatprep.mubr.f32.mxu0 %v66
  %336 = vmatmul.mubr.f32.gmra.mrb[0].mxu0 %v41
  %v337 = vpop.f32.mrb[0].mxu0
  %v338 = vadd.f32 0.0, %v337
  %v339 = vpop.f32.mrb[0].mxu0
  %340 = vmatprep.mubr.f32.mxu0 %v69
  %341 = vmatmul.mubr.f32.gmra.mrb[0].mxu0 %v43
  %v342 = vpop.f32.mrb[0].mxu0
  %v343 = vadd.f32 0.0, %v342
  %v344 = vpop.f32.mrb[0].mxu0
  %345 = vdwg.mxu0
  %v346 = vld [vmem:[%s5] sm:$0xff]
  %v347 = vld [vmem:[%s5 + $0x8] sm:$0xff]
  %v348 = vld [vmem:[%s5 + $0x10] sm:$0xff]
  %v349 = vld [vmem:[%s5 + $0x18] sm:$0xff]
  %v350 = vld [vmem:[%s5 + $0x20] sm:$0xff]
  %v351 = vld [vmem:[%s5 + $0x28] sm:$0xff]
  %v352 = vld [vmem:[%s5 + $0x30] sm:$0xff]
  %v353 = vld [vmem:[%s5 + $0x38] sm:$0xff]
  %v354 = vld [vmem:[%s5 + $0x40] sm:$0xff]
  %v355 = vld [vmem:[%s5 + $0x48] sm:$0xff]
  %v356 = vld [vmem:[%s5 + $0x50] sm:$0xff]
  %v357 = vld [vmem:[%s5 + $0x58] sm:$0xff]
  %v358 = vld [vmem:[%s5 + $0x60] sm:$0xff]
  %v359 = vld [vmem:[%s5 + $0x68] sm:$0xff]
  %v360 = vld [vmem:[%s5 + $0x70] sm:$0xff]
  %v361 = vld [vmem:[%s5 + $0x78] sm:$0xff]
  %v362 = vld [vmem:[%s5 + $0x80] sm:$0xff]
  %v363 = vld [vmem:[%s5 + $0x88] sm:$0xff]
  %v364 = vld [vmem:[%s5 + $0x90] sm:$0x3f]
  %v366 = vsel %vm71, %v364, 0
  %368 = vmatprep.subr.mxu0 0.0
  %369 = vmatpush1.msra.mxu0 %v346
  %370 = vmatprep.subr.mxu0 0.0
  %371 = vmatpush1.msra.mxu0 %v347
  %372 = vmatprep.subr.mxu0 0.0
  %373 = vmatpush1.msra.mxu0 %v348
  %374 = vmatprep.subr.mxu0 0.0
  %375 = vmatpush1.msra.mxu0 %v349
  %376 = vmatprep.subr.mxu0 0.0
  %377 = vmatpush1.msra.mxu0 %v350
  %378 = vmatprep.subr.mxu0 0.0
  %379 = vmatpush1.msra.mxu0 %v351
  %380 = vmatprep.subr.mxu0 0.0
  %381 = vmatpush1.msra.mxu0 %v352
  %382 = vmatprep.subr.mxu0 0.0
  %383 = vmatpush1.msra.mxu0 %v353
  %384 = vmatprep.subr.mxu0 0.0
  %385 = vmatpush1.msra.mxu0 %v354
  %386 = vmatprep.subr.mxu0 0.0
  %387 = vmatpush1.msra.mxu0 %v355
  %388 = vmatprep.subr.mxu0 0.0
  %389 = vmatpush1.msra.mxu0 %v356
  %390 = vmatprep.subr.mxu0 0.0
  %391 = vmatpush1.msra.mxu0 %v357
  %392 = vmatprep.subr.mxu0 0.0
  %393 = vmatpush1.msra.mxu0 %v358
  %394 = vmatprep.subr.mxu0 0.0
  %395 = vmatpush1.msra.mxu0 %v359
  %396 = vmatprep.subr.mxu0 0.0
  %397 = vmatpush1.msra.mxu0 %v360
  %398 = vmatprep.subr.mxu0 0.0
  %399 = vmatpush1.msra.mxu0 %v361
  %400 = vmatprep.subr.mxu0 0.0
  %401 = vmatpush1.msra.mxu0 %v362
  %402 = vmatprep.subr.mxu0 0.0
  %403 = vmatpush1.msra.mxu0 %v363
  %404 = vmatprep.subr.mxu0 0.0
  %405 = vmatpush1.msra.mxu0 %v366
  %406 = vmatprep.subr.mxu0 0.0
  %407 = vmatpush1.msra.mxu0 0.0
  %408 = vmatprep.subr.mxu0 0.0
  %409 = vmatpush1.msra.mxu0 0.0
  %410 = vmatprep.subr.mxu0 0.0
  %411 = vmatpush1.msra.mxu0 0.0
  %412 = vmatprep.subr.mxu0 0.0
  %413 = vmatpush1.msra.mxu0 0.0
  %414 = vmatprep.subr.mxu0 0.0
  %415 = vmatpush1.msra.mxu0 0.0
  %416 = vmatprep.subr.mxu0 0.0
  %417 = vmatpush1.msra.mxu0 0.0
  %418 = vmatprep.subr.mxu0 0.0
  %419 = vmatpush1.msra.mxu0 0.0
  %420 = vmatprep.subr.mxu0 0.0
  %421 = vmatpush1.msra.mxu0 0.0
  %422 = vmatprep.subr.mxu0 0.0
  %423 = vmatpush1.msra.mxu0 0.0
  %424 = vmatprep.subr.mxu0 0.0
  %425 = vmatpush1.msra.mxu0 0.0
  %426 = vmatprep.subr.mxu0 0.0
  %427 = vmatpush1.msra.mxu0 0.0
  %428 = vmatprep.subr.mxu0 0.0
  %429 = vmatpush1.msra.mxu0 0.0
  %430 = vmatprep.subr.mxu0 0.0
  %431 = vmatpush1.msra.mxu0 0.0
  %432 = vmatprep.mubr.f32.mxu0 %v66
  %433 = vmatmul.mubr.f32.gmra.mrb[0].mxu0 %v41
  %v434 = vpop.f32.mrb[0].mxu0
  %v435 = vadd.f32 0.0, %v434
  %v436 = vpop.f32.mrb[0].mxu0
  %437 = vmatprep.mubr.f32.mxu0 %v69
  %438 = vmatmul.mubr.f32.gmra.mrb[0].mxu0 %v43
  %v439 = vpop.f32.mrb[0].mxu0
  %v440 = vadd.f32 0.0, %v439
  %v441 = vpop.f32.mrb[0].mxu0
  %442 = vdwg.mxu0
  %v443 = vmax.f32 %v338, %v435
  %v444 = vmax.f32 %v343, %v440
  %v445 = vmax.f32 %v247, %v443
  %v446 = vmax.f32 %v248, %v444
  %v447 = vld [vmem:[%s1] sm:$0xff]
  %v448 = vld [vmem:[%s1 + $0x8] sm:$0xff]
  %450 = vset.pattern.permute.xlu0 0
  %451 = vperm.xlu0 %450, %v447
  %v452 = vpop.permute.xlu0 %451
  %455 = vset.pattern.permute.xlu0 0
  %456 = vperm.xlu0 %455, %v448
  %v457 = vpop.permute.xlu0 %456
  %v459 = vadd.f32 %v445, %v452
  %v460 = vadd.f32 %v446, %v457
  %v461 = vmax.f32 %v459, 0.0
  %v462 = vmax.f32 %v460, 0.0
  %vm463 = vcmask 15360
  %464 = vst.msk [vmem:[#allocation2] sm:$0xff] %vm463, %v461
  %465 = vst.msk [vmem:[#allocation2 + $0x8] sm:$0xff] %vm463, %v462
  %468 = vrot.lane.b32.xlu0 %v461, 126
  %v469 = vpop.permute.xlu0 %468
  %470 = vrot.lane.b32.xlu0 %v462, 126
  %v471 = vpop.permute.xlu0 %470
  %474 = vst.msk [vmem:[#allocation2 + $0x10] sm:$0xff] %vm463, %v469
  %475 = vst.msk [vmem:[#allocation2 + $0x18] sm:$0xff] %vm463, %v471
  %476 = vrot.lane.b32.xlu0 %v461, 124
  %v477 = vpop.permute.xlu0 %476
  %478 = vrot.lane.b32.xlu0 %v462, 124
  %v479 = vpop.permute.xlu0 %478
  %482 = vst.msk [vmem:[#allocation2 + $0x20] sm:$0xff] %vm463, %v477
  %483 = vst.msk [vmem:[#allocation2 + $0x28] sm:$0xff] %vm463, %v479
  %484 = vrot.lane.b32.xlu0 %v461, 122
  %v485 = vpop.permute.xlu0 %484
  %486 = vrot.lane.b32.xlu0 %v462, 122
  %v487 = vpop.permute.xlu0 %486
  %490 = vst.msk [vmem:[#allocation2 + $0x30] sm:$0xff] %vm463, %v485
  %491 = vst.msk [vmem:[#allocation2 + $0x38] sm:$0xff] %vm463, %v487
  %492 = vrot.lane.b32.xlu0 %v461, 120
  %v493 = vpop.permute.xlu0 %492
  %494 = vrot.lane.b32.xlu0 %v462, 120
  %v495 = vpop.permute.xlu0 %494
  %498 = vst.msk [vmem:[#allocation2 + $0x40] sm:$0xff] %vm463, %v493
  %499 = vst.msk [vmem:[#allocation2 + $0x48] sm:$0xff] %vm463, %v495
  %500 = vrot.lane.b32.xlu0 %v461, 118
  %v501 = vpop.permute.xlu0 %500
  %502 = vrot.lane.b32.xlu0 %v462, 118
  %v503 = vpop.permute.xlu0 %502
  %506 = vst.msk [vmem:[#allocation2 + $0x50] sm:$0xff] %vm463, %v501
  %507 = vst.msk [vmem:[#allocation2 + $0x58] sm:$0xff] %vm463, %v503
  %508 = vrot.lane.b32.xlu0 %v461, 116
  %v509 = vpop.permute.xlu0 %508
  %510 = vrot.lane.b32.xlu0 %v462, 116
  %v511 = vpop.permute.xlu0 %510
  %514 = vst.msk [vmem:[#allocation2 + $0x60] sm:$0xff] %vm463, %v509
  %515 = vst.msk [vmem:[#allocation2 + $0x68] sm:$0xff] %vm463, %v511
  %516 = vrot.lane.b32.xlu0 %v461, 114
  %v517 = vpop.permute.xlu0 %516
  %518 = vrot.lane.b32.xlu0 %v462, 114
  %v519 = vpop.permute.xlu0 %518
  %522 = vst.msk [vmem:[#allocation2 + $0x70] sm:$0xff] %vm463, %v517
  %523 = vst.msk [vmem:[#allocation2 + $0x78] sm:$0xff] %vm463, %v519
  %524 = vrot.lane.b32.xlu0 %v461, 112
  %v525 = vpop.permute.xlu0 %524
  %526 = vrot.lane.b32.xlu0 %v462, 112
  %v527 = vpop.permute.xlu0 %526
  %530 = vst.msk [vmem:[#allocation2 + $0x80] sm:$0xff] %vm463, %v525
  %531 = vst.msk [vmem:[#allocation2 + $0x88] sm:$0xff] %vm463, %v527
  %532 = vrot.lane.b32.xlu0 %v461, 110
  %v533 = vpop.permute.xlu0 %532
  %534 = vrot.lane.b32.xlu0 %v462, 110
  %v535 = vpop.permute.xlu0 %534
  %538 = vst.msk [vmem:[#allocation2 + $0x90] sm:$0xff] %vm463, %v533
  %539 = vst.msk [vmem:[#allocation2 + $0x98] sm:$0xff] %vm463, %v535
  %540 = vrot.lane.b32.xlu0 %v461, 108
  %v541 = vpop.permute.xlu0 %540
  %542 = vrot.lane.b32.xlu0 %v462, 108
  %v543 = vpop.permute.xlu0 %542
  %546 = vst.msk [vmem:[#allocation2 + $0xa0] sm:$0xff] %vm463, %v541
  %547 = vst.msk [vmem:[#allocation2 + $0xa8] sm:$0xff] %vm463, %v543
  %548 = vrot.lane.b32.xlu0 %v461, 106
  %v549 = vpop.permute.xlu0 %548
  %550 = vrot.lane.b32.xlu0 %v462, 106
  %v551 = vpop.permute.xlu0 %550
  %554 = vst.msk [vmem:[#allocation2 + $0xb0] sm:$0xff] %vm463, %v549
  %555 = vst.msk [vmem:[#allocation2 + $0xb8] sm:$0xff] %vm463, %v551
  %556 = vrot.lane.b32.xlu0 %v461, 104
  %v557 = vpop.permute.xlu0 %556
  %558 = vrot.lane.b32.xlu0 %v462, 104
  %v559 = vpop.permute.xlu0 %558
  %562 = vst.msk [vmem:[#allocation2 + $0xc0] sm:$0xff] %vm463, %v557
  %563 = vst.msk [vmem:[#allocation2 + $0xc8] sm:$0xff] %vm463, %v559
  %564 = vrot.lane.b32.xlu0 %v461, 102
  %v565 = vpop.permute.xlu0 %564
  %566 = vrot.lane.b32.xlu0 %v462, 102
  %v567 = vpop.permute.xlu0 %566
  %570 = vst.msk [vmem:[#allocation2 + $0xd0] sm:$0xff] %vm463, %v565
  %571 = vst.msk [vmem:[#allocation2 + $0xd8] sm:$0xff] %vm463, %v567
  %572 = vrot.lane.b32.xlu0 %v461, 100
  %v573 = vpop.permute.xlu0 %572
  %574 = vrot.lane.b32.xlu0 %v462, 100
  %v575 = vpop.permute.xlu0 %574
  %578 = vst.msk [vmem:[#allocation2 + $0xe0] sm:$0xff] %vm463, %v573
  %579 = vst.msk [vmem:[#allocation2 + $0xe8] sm:$0xff] %vm463, %v575
  %580 = vrot.lane.b32.xlu0 %v461, 98
  %v581 = vpop.permute.xlu0 %580
  %582 = vrot.lane.b32.xlu0 %v462, 98
  %v583 = vpop.permute.xlu0 %582
  %586 = vst.msk [vmem:[#allocation2 + $0xf0] sm:$0xff] %vm463, %v581
  %587 = vst.msk [vmem:[#allocation2 + $0xf8] sm:$0xff] %vm463, %v583
  %588 = vrot.lane.b32.xlu0 %v461, 96
  %v589 = vpop.permute.xlu0 %588
  %590 = vrot.lane.b32.xlu0 %v462, 96
  %v591 = vpop.permute.xlu0 %590
  %594 = vst.msk [vmem:[#allocation2 + $0x100] sm:$0xff] %vm463, %v589
  %595 = vst.msk [vmem:[#allocation2 + $0x108] sm:$0xff] %vm463, %v591
  %596 = vrot.lane.b32.xlu0 %v461, 94
  %v597 = vpop.permute.xlu0 %596
  %598 = vrot.lane.b32.xlu0 %v462, 94
  %v599 = vpop.permute.xlu0 %598
  %602 = vst.msk [vmem:[#allocation2 + $0x110] sm:$0xff] %vm463, %v597
  %603 = vst.msk [vmem:[#allocation2 + $0x118] sm:$0xff] %vm463, %v599
  %604 = vrot.lane.b32.xlu0 %v461, 92
  %v605 = vpop.permute.xlu0 %604
  %606 = vrot.lane.b32.xlu0 %v462, 92
  %v607 = vpop.permute.xlu0 %606
  %610 = vst.msk [vmem:[#allocation2 + $0x120] sm:$0xff] %vm463, %v605
  %611 = vst.msk [vmem:[#allocation2 + $0x128] sm:$0xff] %vm463, %v607
  %612 = vrot.lane.b32.xlu0 %v461, 90
  %v613 = vpop.permute.xlu0 %612
  %614 = vrot.lane.b32.xlu0 %v462, 90
  %v615 = vpop.permute.xlu0 %614
  %618 = vst.msk [vmem:[#allocation2 + $0x130] sm:$0xff] %vm463, %v613
  %619 = vst.msk [vmem:[#allocation2 + $0x138] sm:$0xff] %vm463, %v615
  %620 = vrot.lane.b32.xlu0 %v461, 88
  %v621 = vpop.permute.xlu0 %620
  %622 = vrot.lane.b32.xlu0 %v462, 88
  %v623 = vpop.permute.xlu0 %622
  %626 = vst.msk [vmem:[#allocation2 + $0x140] sm:$0xff] %vm463, %v621
  %627 = vst.msk [vmem:[#allocation2 + $0x148] sm:$0xff] %vm463, %v623
  %628 = vrot.lane.b32.xlu0 %v461, 86
  %v629 = vpop.permute.xlu0 %628
  %630 = vrot.lane.b32.xlu0 %v462, 86
  %v631 = vpop.permute.xlu0 %630
  %634 = vst.msk [vmem:[#allocation2 + $0x150] sm:$0xff] %vm463, %v629
  %635 = vst.msk [vmem:[#allocation2 + $0x158] sm:$0xff] %vm463, %v631
  %636 = vrot.lane.b32.xlu0 %v461, 84
  %v637 = vpop.permute.xlu0 %636
  %638 = vrot.lane.b32.xlu0 %v462, 84
  %v639 = vpop.permute.xlu0 %638
  %642 = vst.msk [vmem:[#allocation2 + $0x160] sm:$0xff] %vm463, %v637
  %643 = vst.msk [vmem:[#allocation2 + $0x168] sm:$0xff] %vm463, %v639
  %644 = vrot.lane.b32.xlu0 %v461, 82
  %v645 = vpop.permute.xlu0 %644
  %646 = vrot.lane.b32.xlu0 %v462, 82
  %v647 = vpop.permute.xlu0 %646
  %650 = vst.msk [vmem:[#allocation2 + $0x170] sm:$0xff] %vm463, %v645
  %651 = vst.msk [vmem:[#allocation2 + $0x178] sm:$0xff] %vm463, %v647
  %652 = vrot.lane.b32.xlu0 %v461, 80
  %v653 = vpop.permute.xlu0 %652
  %654 = vrot.lane.b32.xlu0 %v462, 80
  %v655 = vpop.permute.xlu0 %654
  %658 = vst.msk [vmem:[#allocation2 + $0x180] sm:$0xff] %vm463, %v653
  %659 = vst.msk [vmem:[#allocation2 + $0x188] sm:$0xff] %vm463, %v655
  %v660 = vld [vmem:[%s6] sm:$0xff]
  %v661 = vld [vmem:[%s6 + $0x8] sm:$0xff]
  %v662 = vld [vmem:[%s6 + $0x10] sm:$0xff]
  %v663 = vld [vmem:[%s6 + $0x18] sm:$0xff]
  %v664 = vld [vmem:[%s6 + $0x20] sm:$0xff]
  %v665 = vld [vmem:[%s6 + $0x28] sm:$0xff]
  %v666 = vld [vmem:[%s6 + $0x30] sm:$0xff]
  %v667 = vld [vmem:[%s6 + $0x38] sm:$0xff]
  %v668 = vld [vmem:[%s6 + $0x40] sm:$0xff]
  %v669 = vld [vmem:[%s6 + $0x48] sm:$0xff]
  %v670 = vld [vmem:[%s6 + $0x50] sm:$0xff]
  %v671 = vld [vmem:[%s6 + $0x58] sm:$0xff]
  %v672 = vld [vmem:[%s6 + $0x60] sm:$0xff]
  %v673 = vld [vmem:[%s6 + $0x68] sm:$0xff]
  %v674 = vld [vmem:[%s6 + $0x70] sm:$0xff]
  %v675 = vld [vmem:[%s6 + $0x78] sm:$0xff]
  %v676 = vld [vmem:[%s6 + $0x80] sm:$0xff]
  %v677 = vld [vmem:[%s6 + $0x88] sm:$0xff]
  %v678 = vld [vmem:[%s6 + $0x90] sm:$0xff]
  %v679 = vld [vmem:[%s6 + $0x98] sm:$0xff]
  %v680 = vld [vmem:[%s6 + $0xa0] sm:$0xff]
  %v681 = vld [vmem:[%s6 + $0xa8] sm:$0xff]
  %v682 = vld [vmem:[%s6 + $0xb0] sm:$0xff]
  %v683 = vld [vmem:[%s6 + $0xb8] sm:$0xff]
  %v684 = vld [vmem:[%s6 + $0xc0] sm:$0xff]
  %v685 = vld [vmem:[%s6 + $0xc8] sm:$0xff]
  %v686 = vld [vmem:[%s6 + $0xd0] sm:$0xff]
  %v687 = vld [vmem:[%s6 + $0xd8] sm:$0xff]
  %v688 = vld [vmem:[%s6 + $0xe0] sm:$0xff]
  %v689 = vld [vmem:[%s6 + $0xe8] sm:$0xff]
  %v690 = vld [vmem:[%s6 + $0xf0] sm:$0xff]
  %v691 = vld [vmem:[%s6 + $0xf8] sm:$0xff]
  %v692 = vld [vmem:[%s6 + $0x100] sm:$0xff]
  %v693 = vld [vmem:[%s6 + $0x108] sm:$0xff]
  %v694 = vld [vmem:[%s6 + $0x110] sm:$0xff]
  %v695 = vld [vmem:[%s6 + $0x118] sm:$0xff]
  %v696 = vld [vmem:[%s6 + $0x120] sm:$0xff]
  %v697 = vld [vmem:[%s6 + $0x128] sm:$0xff]
  %v698 = vld [vmem:[%s6 + $0x130] sm:$0xff]
  %v699 = vld [vmem:[%s6 + $0x138] sm:$0xff]
  %v700 = vld [vmem:[%s6 + $0x140] sm:$0xff]
  %v701 = vld [vmem:[%s6 + $0x148] sm:$0xff]
  %v702 = vld [vmem:[%s6 + $0x150] sm:$0xff]
  %v703 = vld [vmem:[%s6 + $0x158] sm:$0xff]
  %v704 = vld [vmem:[%s6 + $0x160] sm:$0xff]
  %v705 = vld [vmem:[%s6 + $0x168] sm:$0xff]
  %v706 = vld [vmem:[%s6 + $0x170] sm:$0xff]
  %v707 = vld [vmem:[%s6 + $0x178] sm:$0xff]
  %v708 = vld [vmem:[%s6 + $0x180] sm:$0xff]
  %v709 = vld [vmem:[%s6 + $0x188] sm:$0xff]
  %v710 = vld [vmem:[%s6 + $0x190] sm:$0xff]
  %v711 = vld [vmem:[%s6 + $0x198] sm:$0xff]
  %v712 = vld [vmem:[%s6 + $0x1a0] sm:$0xff]
  %v713 = vld [vmem:[%s6 + $0x1a8] sm:$0xff]
  %v714 = vld [vmem:[%s6 + $0x1b0] sm:$0xff]
  %v715 = vld [vmem:[%s6 + $0x1b8] sm:$0xff]
  %v716 = vld [vmem:[%s6 + $0x1c0] sm:$0xff]
  %v717 = vld [vmem:[%s6 + $0x1c8] sm:$0xff]
  %v718 = vld [vmem:[%s6 + $0x1d0] sm:$0xff]
  %v719 = vld [vmem:[%s6 + $0x1d8] sm:$0xff]
  %v720 = vld [vmem:[#allocation2] sm:$0xff]
  %v721 = vld [vmem:[#allocation2 + $0x8] sm:$0xff]
  %v722 = vld [vmem:[#allocation2 + $0x10] sm:$0xff]
  %v723 = vld [vmem:[#allocation2 + $0x18] sm:$0xff]
  %v724 = vld [vmem:[#allocation2 + $0x20] sm:$0xff]
  %v725 = vld [vmem:[#allocation2 + $0x28] sm:$0xff]
  %v726 = vld [vmem:[#allocation2 + $0x30] sm:$0xff]
  %v727 = vld [vmem:[#allocation2 + $0x38] sm:$0xff]
  %v728 = vld [vmem:[#allocation2 + $0x40] sm:$0xff]
  %v729 = vld [vmem:[#allocation2 + $0x48] sm:$0xff]
  %v730 = vld [vmem:[#allocation2 + $0x50] sm:$0xff]
  %v731 = vld [vmem:[#allocation2 + $0x58] sm:$0xff]
  %v732 = vld [vmem:[#allocation2 + $0x60] sm:$0xff]
  %v733 = vld [vmem:[#allocation2 + $0x68] sm:$0xff]
  %v734 = vld [vmem:[#allocation2 + $0x70] sm:$0xff]
  %v735 = vld [vmem:[#allocation2 + $0x78] sm:$0xff]
  %v736 = vld [vmem:[#allocation2 + $0x80] sm:$0xff]
  %v737 = vld [vmem:[#allocation2 + $0x88] sm:$0xff]
  %v738 = vld [vmem:[#allocation2 + $0x90] sm:$0xff]
  %v739 = vld [vmem:[#allocation2 + $0x98] sm:$0xff]
  %v740 = vld [vmem:[#allocation2 + $0xa0] sm:$0xff]
  %v741 = vld [vmem:[#allocation2 + $0xa8] sm:$0xff]
  %v742 = vld [vmem:[#allocation2 + $0xb0] sm:$0xff]
  %v743 = vld [vmem:[#allocation2 + $0xb8] sm:$0xff]
  %v744 = vld [vmem:[#allocation2 + $0xc0] sm:$0xff]
  %v745 = vld [vmem:[#allocation2 + $0xc8] sm:$0xff]
  %v746 = vld [vmem:[#allocation2 + $0xd0] sm:$0xff]
  %v747 = vld [vmem:[#allocation2 + $0xd8] sm:$0xff]
  %v748 = vld [vmem:[#allocation2 + $0xe0] sm:$0xff]
  %v749 = vld [vmem:[#allocation2 + $0xe8] sm:$0xff]
  %v750 = vld [vmem:[#allocation2 + $0xf0] sm:$0xff]
  %v751 = vld [vmem:[#allocation2 + $0xf8] sm:$0xff]
  %v752 = vld [vmem:[#allocation2 + $0x100] sm:$0xff]
  %v753 = vld [vmem:[#allocation2 + $0x108] sm:$0xff]
  %v754 = vld [vmem:[#allocation2 + $0x110] sm:$0xff]
  %v755 = vld [vmem:[#allocation2 + $0x118] sm:$0xff]
  %v756 = vld [vmem:[#allocation2 + $0x120] sm:$0xff]
  %v757 = vld [vmem:[#allocation2 + $0x128] sm:$0xff]
  %v758 = vld [vmem:[#allocation2 + $0x130] sm:$0xff]
  %v759 = vld [vmem:[#allocation2 + $0x138] sm:$0xff]
  %v760 = vld [vmem:[#allocation2 + $0x140] sm:$0xff]
  %v761 = vld [vmem:[#allocation2 + $0x148] sm:$0xff]
  %v762 = vld [vmem:[#allocation2 + $0x150] sm:$0xff]
  %v763 = vld [vmem:[#allocation2 + $0x158] sm:$0xff]
  %v764 = vld [vmem:[#allocation2 + $0x160] sm:$0xff]
  %v765 = vld [vmem:[#allocation2 + $0x168] sm:$0xff]
  %v766 = vld [vmem:[#allocation2 + $0x170] sm:$0xff]
  %v767 = vld [vmem:[#allocation2 + $0x178] sm:$0xff]
  %v768 = vld [vmem:[#allocation2 + $0x180] sm:$0xff]
  %v769 = vld [vmem:[#allocation2 + $0x188] sm:$0xff]
  %v770 = vld [vmem:[%s7] sm:$0xff]
  %v771 = vld [vmem:[%s7 + $0x8] sm:$0xff]
  %v772 = vld [vmem:[%s7 + $0x10] sm:$0xff]
  %v773 = vld [vmem:[%s7 + $0x18] sm:$0xff]
  %v774 = vld [vmem:[%s7 + $0x20] sm:$0xff]
  %v775 = vld [vmem:[%s7 + $0x28] sm:$0xff]
  %v776 = vld [vmem:[%s7 + $0x30] sm:$0xff]
  %v777 = vld [vmem:[%s7 + $0x38] sm:$0xff]
  %v778 = vld [vmem:[%s7 + $0x40] sm:$0xff]
  %v779 = vld [vmem:[%s7 + $0x48] sm:$0xff]
  %v780 = vld [vmem:[%s7 + $0x50] sm:$0xff]
  %v781 = vld [vmem:[%s7 + $0x58] sm:$0xff]
  %v782 = vld [vmem:[%s7 + $0x60] sm:$0xff]
  %v783 = vld [vmem:[%s7 + $0x68] sm:$0xff]
  %v784 = vld [vmem:[%s7 + $0x70] sm:$0xff]
  %786 = vset.pattern.permute.xlu0 0
  %787 = vperm.xlu0 %786, %v770
  %v788 = vpop.permute.xlu0 %787
  %791 = vset.pattern.permute.xlu0 0
  %792 = vperm.xlu0 %791, %v771
  %v793 = vpop.permute.xlu0 %792
  %796 = vset.pattern.permute.xlu0 0
  %797 = vperm.xlu0 %796, %v772
  %v798 = vpop.permute.xlu0 %797
  %801 = vset.pattern.permute.xlu0 0
  %802 = vperm.xlu0 %801, %v773
  %v803 = vpop.permute.xlu0 %802
  %806 = vset.pattern.permute.xlu0 0
  %807 = vperm.xlu0 %806, %v774
  %v808 = vpop.permute.xlu0 %807
  %811 = vset.pattern.permute.xlu0 0
  %812 = vperm.xlu0 %811, %v775
  %v813 = vpop.permute.xlu0 %812
  %816 = vset.pattern.permute.xlu0 0
  %817 = vperm.xlu0 %816, %v776
  %v818 = vpop.permute.xlu0 %817
  %821 = vset.pattern.permute.xlu0 0
  %822 = vperm.xlu0 %821, %v777
  %v823 = vpop.permute.xlu0 %822
  %826 = vset.pattern.permute.xlu0 0
  %827 = vperm.xlu0 %826, %v778
  %v828 = vpop.permute.xlu0 %827
  %831 = vset.pattern.permute.xlu0 0
  %832 = vperm.xlu0 %831, %v779
  %v833 = vpop.permute.xlu0 %832
  %836 = vset.pattern.permute.xlu0 0
  %837 = vperm.xlu0 %836, %v780
  %v838 = vpop.permute.xlu0 %837
  %841 = vset.pattern.permute.xlu0 0
  %842 = vperm.xlu0 %841, %v781
  %v843 = vpop.permute.xlu0 %842
  %846 = vset.pattern.permute.xlu0 0
  %847 = vperm.xlu0 %846, %v782
  %v848 = vpop.permute.xlu0 %847
  %851 = vset.pattern.permute.xlu0 0
  %852 = vperm.xlu0 %851, %v783
  %v853 = vpop.permute.xlu0 %852
  %856 = vset.pattern.permute.xlu0 0
  %857 = vperm.xlu0 %856, %v784
  %v858 = vpop.permute.xlu0 %857
  %vm860 = vcmask 130048
  %v862 = vsel %vm860, %v663, 0
  %v865 = vsel %vm860, %v667, 0
  %v868 = vsel %vm860, %v671, 0
  %v871 = vsel %vm860, %v675, 0
  %v874 = vsel %vm860, %v679, 0
  %v877 = vsel %vm860, %v683, 0
  %v880 = vsel %vm860, %v687, 0
  %v883 = vsel %vm860, %v691, 0
  %v886 = vsel %vm860, %v695, 0
  %v889 = vsel %vm860, %v699, 0
  %v892 = vsel %vm860, %v703, 0
  %v895 = vsel %vm860, %v707, 0
  %v898 = vsel %vm860, %v711, 0
  %v901 = vsel %vm860, %v715, 0
  %v904 = vsel %vm860, %v719, 0
  %906 = vmatprep.subr.mxu0 0.0
  %907 = vmatpush1.msra.mxu0 %v720
  %908 = vmatprep.subr.mxu0 0.0
  %909 = vmatpush1.msra.mxu0 %v721
  %910 = vmatprep.subr.mxu0 0.0
  %911 = vmatpush1.msra.mxu0 %v722
  %912 = vmatprep.subr.mxu0 0.0
  %913 = vmatpush1.msra.mxu0 %v723
  %914 = vmatprep.subr.mxu0 0.0
  %915 = vmatpush1.msra.mxu0 %v724
  %916 = vmatprep.subr.mxu0 0.0
  %917 = vmatpush1.msra.mxu0 %v725
  %918 = vmatprep.subr.mxu0 0.0
  %919 = vmatpush1.msra.mxu0 %v726
  %920 = vmatprep.subr.mxu0 0.0
  %921 = vmatpush1.msra.mxu0 %v727
  %922 = vmatprep.subr.mxu0 0.0
  %923 = vmatpush1.msra.mxu0 %v728
  %924 = vmatprep.subr.mxu0 0.0
  %925 = vmatpush1.msra.mxu0 %v729
  %926 = vmatprep.subr.mxu0 0.0
  %927 = vmatpush1.msra.mxu0 %v730
  %928 = vmatprep.subr.mxu0 0.0
  %929 = vmatpush1.msra.mxu0 %v731
  %930 = vmatprep.subr.mxu0 0.0
  %931 = vmatpush1.msra.mxu0 %v732
  %932 = vmatprep.subr.mxu0 0.0
  %933 = vmatpush1.msra.mxu0 %v733
  %934 = vmatprep.subr.mxu0 0.0
  %935 = vmatpush1.msra.mxu0 %v734
  %936 = vmatprep.subr.mxu0 0.0
  %937 = vmatpush1.msra.mxu0 %v735
  %938 = vmatprep.subr.mxu0 0.0
  %939 = vmatpush1.msra.mxu0 %v736
  %940 = vmatprep.subr.mxu0 0.0
  %941 = vmatpush1.msra.mxu0 %v737
  %942 = vmatprep.subr.mxu0 0.0
  %943 = vmatpush1.msra.mxu0 %v738
  %944 = vmatprep.subr.mxu0 0.0
  %945 = vmatpush1.msra.mxu0 %v739
  %946 = vmatprep.subr.mxu0 0.0
  %947 = vmatpush1.msra.mxu0 %v740
  %948 = vmatprep.subr.mxu0 0.0
  %949 = vmatpush1.msra.mxu0 %v741
  %950 = vmatprep.subr.mxu0 0.0
  %951 = vmatpush1.msra.mxu0 %v742
  %952 = vmatprep.subr.mxu0 0.0
  %953 = vmatpush1.msra.mxu0 %v743
  %954 = vmatprep.subr.mxu0 0.0
  %955 = vmatpush1.msra.mxu0 %v744
  %956 = vmatprep.subr.mxu0 0.0
  %957 = vmatpush1.msra.mxu0 %v745
  %958 = vmatprep.subr.mxu0 0.0
  %959 = vmatpush1.msra.mxu0 %v746
  %960 = vmatprep.subr.mxu0 0.0
  %961 = vmatpush1.msra.mxu0 %v747
  %962 = vmatprep.subr.mxu0 0.0
  %963 = vmatpush1.msra.mxu0 %v748
  %964 = vmatprep.subr.mxu0 0.0
  %965 = vmatpush1.msra.mxu0 %v749
  %966 = vmatprep.subr.mxu0 0.0
  %967 = vmatpush1.msra.mxu0 %v750
  %968 = vmatprep.subr.mxu0 0.0
  %969 = vmatpush1.msra.mxu0 %v751
  %970 = vmatprep.mubr.f32.mxu0 %v661
  %971 = vmatmul.mubr.f32.gmra.mrb[0].mxu0 %v660
  %v972 = vpop.f32.mrb[0].mxu0
  %v973 = vadd.f32 %v788, %v972
  %v974 = vpop.f32.mrb[0].mxu0
  %975 = vmatprep.mubr.f32.mxu0 %v665
  %976 = vmatmul.mubr.f32.gmra.mrb[0].mxu0 %v664
  %v977 = vpop.f32.mrb[0].mxu0
  %v978 = vadd.f32 %v793, %v977
  %v979 = vpop.f32.mrb[0].mxu0
  %980 = vmatprep.mubr.f32.mxu0 %v669
  %981 = vmatmul.mubr.f32.gmra.mrb[0].mxu0 %v668
  %v982 = vpop.f32.mrb[0].mxu0
  %v983 = vadd.f32 %v798, %v982
  %v984 = vpop.f32.mrb[0].mxu0
  %985 = vmatprep.mubr.f32.mxu0 %v673
  %986 = vmatmul.mubr.f32.gmra.mrb[0].mxu0 %v672
  %v987 = vpop.f32.mrb[0].mxu0
  %v988 = vadd.f32 %v803, %v987
  %v989 = vpop.f32.mrb[0].mxu0
  %990 = vmatprep.mubr.f32.mxu0 %v677
  %991 = vmatmul.mubr.f32.gmra.mrb[0].mxu0 %v676
  %v992 = vpop.f32.mrb[0].mxu0
  %v993 = vadd.f32 %v808, %v992
  %v994 = vpop.f32.mrb[0].mxu0
  %995 = vmatprep.mubr.f32.mxu0 %v681
  %996 = vmatmul.mubr.f32.gmra.mrb[0].mxu0 %v680
  %v997 = vpop.f32.mrb[0].mxu0
  %v998 = vadd.f32 %v813, %v997
  %v999 = vpop.f32.mrb[0].mxu0
  %1000 = vmatprep.mubr.f32.mxu0 %v685
  %1001 = vmatmul.mubr.f32.gmra.mrb[0].mxu0 %v684
  %v1002 = vpop.f32.mrb[0].mxu0
  %v1003 = vadd.f32 %v818, %v1002
  %v1004 = vpop.f32.mrb[0].mxu0
  %1005 = vmatprep.mubr.f32.mxu0 %v689
  %1006 = vmatmul.mubr.f32.gmra.mrb[0].mxu0 %v688
  %v1007 = vpop.f32.mrb[0].mxu0
  %v1008 = vadd.f32 %v823, %v1007
  %v1009 = vpop.f32.mrb[0].mxu0
  %1010 = vmatprep.mubr.f32.mxu0 %v693
  %1011 = vmatmul.mubr.f32.gmra.mrb[0].mxu0 %v692
  %v1012 = vpop.f32.mrb[0].mxu0
  %v1013 = vadd.f32 %v828, %v1012
  %v1014 = vpop.f32.mrb[0].mxu0
  %1015 = vmatprep.mubr.f32.mxu0 %v697
  %1016 = vmatmul.mubr.f32.gmra.mrb[0].mxu0 %v696
  %v1017 = vpop.f32.mrb[0].mxu0
  %v1018 = vadd.f32 %v833, %v1017
  %v1019 = vpop.f32.mrb[0].mxu0
  %1020 = vmatprep.mubr.f32.mxu0 %v701
  %1021 = vmatmul.mubr.f32.gmra.mrb[0].mxu0 %v700
  %v1022 = vpop.f32.mrb[0].mxu0
  %v1023 = vadd.f32 %v838, %v1022
  %v1024 = vpop.f32.mrb[0].mxu0
  %1025 = vmatprep.mubr.f32.mxu0 %v705
  %1026 = vmatmul.mubr.f32.gmra.mrb[0].mxu0 %v704
  %v1027 = vpop.f32.mrb[0].mxu0
  %v1028 = vadd.f32 %v843, %v1027
  %v1029 = vpop.f32.mrb[0].mxu0
  %1030 = vmatprep.mubr.f32.mxu0 %v709
  %1031 = vmatmul.mubr.f32.gmra.mrb[0].mxu0 %v708
  %v1032 = vpop.f32.mrb[0].mxu0
  %v1033 = vadd.f32 %v848, %v1032
  %v1034 = vpop.f32.mrb[0].mxu0
  %1035 = vmatprep.mubr.f32.mxu0 %v713
  %1036 = vmatmul.mubr.f32.gmra.mrb[0].mxu0 %v712
  %v1037 = vpop.f32.mrb[0].mxu0
  %v1038 = vadd.f32 %v853, %v1037
  %v1039 = vpop.f32.mrb[0].mxu0
  %1040 = vmatprep.mubr.f32.mxu0 %v717
  %1041 = vmatmul.mubr.f32.gmra.mrb[0].mxu0 %v716
  %v1042 = vpop.f32.mrb[0].mxu0
  %v1043 = vadd.f32 %v858, %v1042
  %v1044 = vpop.f32.mrb[0].mxu0
  %1045 = vdwg.mxu0
  %1046 = vmatprep.subr.mxu0 0.0
  %1047 = vmatpush1.msra.mxu0 %v752
  %1048 = vmatprep.subr.mxu0 0.0
  %1049 = vmatpush1.msra.mxu0 %v753
  %1050 = vmatprep.subr.mxu0 0.0
  %1051 = vmatpush1.msra.mxu0 %v754
  %1052 = vmatprep.subr.mxu0 0.0
  %1053 = vmatpush1.msra.mxu0 %v755
  %1054 = vmatprep.subr.mxu0 0.0
  %1055 = vmatpush1.msra.mxu0 %v756
  %1056 = vmatprep.subr.mxu0 0.0
  %1057 = vmatpush1.msra.mxu0 %v757
  %1058 = vmatprep.subr.mxu0 0.0
  %1059 = vmatpush1.msra.mxu0 %v758
  %1060 = vmatprep.subr.mxu0 0.0
  %1061 = vmatpush1.msra.mxu0 %v759
  %1062 = vmatprep.subr.mxu0 0.0
  %1063 = vmatpush1.msra.mxu0 %v760
  %1064 = vmatprep.subr.mxu0 0.0
  %1065 = vmatpush1.msra.mxu0 %v761
  %1066 = vmatprep.subr.mxu0 0.0
  %1067 = vmatpush1.msra.mxu0 %v762
  %1068 = vmatprep.subr.mxu0 0.0
  %1069 = vmatpush1.msra.mxu0 %v763
  %1070 = vmatprep.subr.mxu0 0.0
  %1071 = vmatpush1.msra.mxu0 %v764
  %1072 = vmatprep.subr.mxu0 0.0
  %1073 = vmatpush1.msra.mxu0 %v765
  %1074 = vmatprep.subr.mxu0 0.0
  %1075 = vmatpush1.msra.mxu0 %v766
  %1076 = vmatprep.subr.mxu0 0.0
  %1077 = vmatpush1.msra.mxu0 %v767
  %1078 = vmatprep.subr.mxu0 0.0
  %1079 = vmatpush1.msra.mxu0 %v768
  %1080 = vmatprep.subr.mxu0 0.0
  %1081 = vmatpush1.msra.mxu0 %v769
  %1082 = vmatprep.subr.mxu0 0.0
  %1083 = vmatpush1.msra.mxu0 0.0
  %1084 = vmatprep.subr.mxu0 0.0
  %1085 = vmatpush1.msra.mxu0 0.0
  %1086 = vmatprep.subr.mxu0 0.0
  %1087 = vmatpush1.msra.mxu0 0.0
  %1088 = vmatprep.subr.mxu0 0.0
  %1089 = vmatpush1.msra.mxu0 0.0
  %1090 = vmatprep.subr.mxu0 0.0
  %1091 = vmatpush1.msra.mxu0 0.0
  %1092 = vmatprep.subr.mxu0 0.0
  %1093 = vmatpush1.msra.mxu0 0.0
  %1094 = vmatprep.subr.mxu0 0.0
  %1095 = vmatpush1.msra.mxu0 0.0
  %1096 = vmatprep.subr.mxu0 0.0
  %1097 = vmatpush1.msra.mxu0 0.0
  %1098 = vmatprep.subr.mxu0 0.0
  %1099 = vmatpush1.msra.mxu0 0.0
  %1100 = vmatprep.subr.mxu0 0.0
  %1101 = vmatpush1.msra.mxu0 0.0
  %1102 = vmatprep.subr.mxu0 0.0
  %1103 = vmatpush1.msra.mxu0 0.0
  %1104 = vmatprep.subr.mxu0 0.0
  %1105 = vmatpush1.msra.mxu0 0.0
  %1106 = vmatprep.subr.mxu0 0.0
  %1107 = vmatpush1.msra.mxu0 0.0
  %1108 = vmatprep.subr.mxu0 0.0
  %1109 = vmatpush1.msra.mxu0 0.0
  %1110 = vmatprep.mubr.f32.mxu0 %v862
  %1111 = vmatmul.mubr.f32.gmra.mrb[0].mxu0 %v662
  %v1112 = vpop.f32.mrb[0].mxu0
  %v1113 = vadd.f32 %v973, %v1112
  %v1114 = vpop.f32.mrb[0].mxu0
  %1115 = vmatprep.mubr.f32.mxu0 %v865
  %1116 = vmatmul.mubr.f32.gmra.mrb[0].mxu0 %v666
  %v1117 = vpop.f32.mrb[0].mxu0
  %v1118 = vadd.f32 %v978, %v1117
  %v1119 = vpop.f32.mrb[0].mxu0
  %1120 = vmatprep.mubr.f32.mxu0 %v868
  %1121 = vmatmul.mubr.f32.gmra.mrb[0].mxu0 %v670
  %v1122 = vpop.f32.mrb[0].mxu0
  %v1123 = vadd.f32 %v983, %v1122
  %v1124 = vpop.f32.mrb[0].mxu0
  %1125 = vmatprep.mubr.f32.mxu0 %v871
  %1126 = vmatmul.mubr.f32.gmra.mrb[0].mxu0 %v674
  %v1127 = vpop.f32.mrb[0].mxu0
  %v1128 = vadd.f32 %v988, %v1127
  %v1129 = vpop.f32.mrb[0].mxu0
  %1130 = vmatprep.mubr.f32.mxu0 %v874
  %1131 = vmatmul.mubr.f32.gmra.mrb[0].mxu0 %v678
  %v1132 = vpop.f32.mrb[0].mxu0
  %v1133 = vadd.f32 %v993, %v1132
  %v1134 = vpop.f32.mrb[0].mxu0
  %1135 = vmatprep.mubr.f32.mxu0 %v877
  %1136 = vmatmul.mubr.f32.gmra.mrb[0].mxu0 %v682
  %v1137 = vpop.f32.mrb[0].mxu0
  %v1138 = vadd.f32 %v998, %v1137
  %v1139 = vpop.f32.mrb[0].mxu0
  %1140 = vmatprep.mubr.f32.mxu0 %v880
  %1141 = vmatmul.mubr.f32.gmra.mrb[0].mxu0 %v686
  %v1142 = vpop.f32.mrb[0].mxu0
  %v1143 = vadd.f32 %v1003, %v1142
  %v1144 = vpop.f32.mrb[0].mxu0
  %1145 = vmatprep.mubr.f32.mxu0 %v883
  %1146 = vmatmul.mubr.f32.gmra.mrb[0].mxu0 %v690
  %v1147 = vpop.f32.mrb[0].mxu0
  %v1148 = vadd.f32 %v1008, %v1147
  %v1149 = vpop.f32.mrb[0].mxu0
  %1150 = vmatprep.mubr.f32.mxu0 %v886
  %1151 = vmatmul.mubr.f32.gmra.mrb[0].mxu0 %v694
  %v1152 = vpop.f32.mrb[0].mxu0
  %v1153 = vadd.f32 %v1013, %v1152
  %v1154 = vpop.f32.mrb[0].mxu0
  %1155 = vmatprep.mubr.f32.mxu0 %v889
  %1156 = vmatmul.mubr.f32.gmra.mrb[0].mxu0 %v698
  %v1157 = vpop.f32.mrb[0].mxu0
  %v1158 = vadd.f32 %v1018, %v1157
  %v1159 = vpop.f32.mrb[0].mxu0
  %1160 = vmatprep.mubr.f32.mxu0 %v892
  %1161 = vmatmul.mubr.f32.gmra.mrb[0].mxu0 %v702
  %v1162 = vpop.f32.mrb[0].mxu0
  %v1163 = vadd.f32 %v1023, %v1162
  %v1164 = vpop.f32.mrb[0].mxu0
  %1165 = vmatprep.mubr.f32.mxu0 %v895
  %1166 = vmatmul.mubr.f32.gmra.mrb[0].mxu0 %v706
  %v1167 = vpop.f32.mrb[0].mxu0
  %v1168 = vadd.f32 %v1028, %v1167
  %v1169 = vpop.f32.mrb[0].mxu0
  %1170 = vmatprep.mubr.f32.mxu0 %v898
  %1171 = vmatmul.mubr.f32.gmra.mrb[0].mxu0 %v710
  %v1172 = vpop.f32.mrb[0].mxu0
  %v1173 = vadd.f32 %v1033, %v1172
  %v1174 = vpop.f32.mrb[0].mxu0
  %1175 = vmatprep.mubr.f32.mxu0 %v901
  %1176 = vmatmul.mubr.f32.gmra.mrb[0].mxu0 %v714
  %v1177 = vpop.f32.mrb[0].mxu0
  %v1178 = vadd.f32 %v1038, %v1177
  %v1179 = vpop.f32.mrb[0].mxu0
  %1180 = vmatprep.mubr.f32.mxu0 %v904
  %1181 = vmatmul.mubr.f32.gmra.mrb[0].mxu0 %v718
  %v1182 = vpop.f32.mrb[0].mxu0
  %v1183 = vadd.f32 %v1043, %v1182
  %v1184 = vpop.f32.mrb[0].mxu0
  %1185 = vdwg.mxu0
  %v1186 = vmax.f32 %v1113, 0.0
  %v1187 = vmax.f32 %v1118, 0.0
  %v1188 = vmax.f32 %v1123, 0.0
  %v1189 = vmax.f32 %v1128, 0.0
  %v1190 = vmax.f32 %v1133, 0.0
  %v1191 = vmax.f32 %v1138, 0.0
  %v1192 = vmax.f32 %v1143, 0.0
  %v1193 = vmax.f32 %v1148, 0.0
  %v1194 = vmax.f32 %v1153, 0.0
  %v1195 = vmax.f32 %v1158, 0.0
  %v1196 = vmax.f32 %v1163, 0.0
  %v1197 = vmax.f32 %v1168, 0.0
  %v1198 = vmax.f32 %v1173, 0.0
  %v1199 = vmax.f32 %v1178, 0.0
  %v1200 = vmax.f32 %v1183, 0.0
  %v1201 = vld [vmem:[%s8] sm:$0xff]
  %v1202 = vld [vmem:[%s8 + $0x8] sm:$0xff]
  %v1203 = vld [vmem:[%s8 + $0x10] sm:$0xff]
  %v1204 = vld [vmem:[%s8 + $0x18] sm:$0xff]
  %v1205 = vld [vmem:[%s8 + $0x20] sm:$0xff]
  %v1206 = vld [vmem:[%s8 + $0x28] sm:$0xff]
  %v1207 = vld [vmem:[%s8 + $0x30] sm:$0xff]
  %v1208 = vld [vmem:[%s8 + $0x38] sm:$0xff]
  %v1209 = vld [vmem:[%s8 + $0x40] sm:$0xff]
  %v1210 = vld [vmem:[%s8 + $0x48] sm:$0xff]
  %v1211 = vld [vmem:[%s8 + $0x50] sm:$0xf]
  %v1212 = vld [vmem:[%s9] sm:$0xff]
  %v1213 = vld [vmem:[%s9 + $0x8] sm:$0xff]
  %v1214 = vld [vmem:[%s9 + $0x10] sm:$0xff]
  %v1215 = vld [vmem:[%s9 + $0x18] sm:$0xff]
  %v1216 = vld [vmem:[%s9 + $0x20] sm:$0xff]
  %v1217 = vld [vmem:[%s9 + $0x28] sm:$0xff]
  %v1218 = vld [vmem:[%s9 + $0x30] sm:$0xff]
  %v1219 = vld [vmem:[%s9 + $0x38] sm:$0xff]
  %v1220 = vld [vmem:[%s9 + $0x40] sm:$0xff]
  %v1221 = vld [vmem:[%s9 + $0x48] sm:$0xff]
  %v1222 = vld [vmem:[%s9 + $0x50] sm:$0xf]
  %1224 = vset.pattern.permute.xlu0 0
  %1225 = vperm.xlu0 %1224, %v1212
  %v1226 = vpop.permute.xlu0 %1225
  %1229 = vset.pattern.permute.xlu0 0
  %1230 = vperm.xlu0 %1229, %v1213
  %v1231 = vpop.permute.xlu0 %1230
  %1234 = vset.pattern.permute.xlu0 0
  %1235 = vperm.xlu0 %1234, %v1214
  %v1236 = vpop.permute.xlu0 %1235
  %1239 = vset.pattern.permute.xlu0 0
  %1240 = vperm.xlu0 %1239, %v1215
  %v1241 = vpop.permute.xlu0 %1240
  %1244 = vset.pattern.permute.xlu0 0
  %1245 = vperm.xlu0 %1244, %v1216
  %v1246 = vpop.permute.xlu0 %1245
  %1249 = vset.pattern.permute.xlu0 0
  %1250 = vperm.xlu0 %1249, %v1217
  %v1251 = vpop.permute.xlu0 %1250
  %1254 = vset.pattern.permute.xlu0 0
  %1255 = vperm.xlu0 %1254, %v1218
  %v1256 = vpop.permute.xlu0 %1255
  %1259 = vset.pattern.permute.xlu0 0
  %1260 = vperm.xlu0 %1259, %v1219
  %v1261 = vpop.permute.xlu0 %1260
  %1264 = vset.pattern.permute.xlu0 0
  %1265 = vperm.xlu0 %1264, %v1220
  %v1266 = vpop.permute.xlu0 %1265
  %1269 = vset.pattern.permute.xlu0 0
  %1270 = vperm.xlu0 %1269, %v1221
  %v1271 = vpop.permute.xlu0 %1270
  %1274 = vset.pattern.permute.xlu0 0
  %1275 = vperm.xlu0 %1274, %v1222
  %v1276 = vpop.permute.xlu0 %1275
  %vm1278 = vcmask 982016
  %v1280 = vsel %vm1278, %v1201, 0
  %v1283 = vsel %vm1278, %v1202, 0
  %v1286 = vsel %vm1278, %v1203, 0
  %v1289 = vsel %vm1278, %v1204, 0
  %v1292 = vsel %vm1278, %v1205, 0
  %v1295 = vsel %vm1278, %v1206, 0
  %v1298 = vsel %vm1278, %v1207, 0
  %v1301 = vsel %vm1278, %v1208, 0
  %v1304 = vsel %vm1278, %v1209, 0
  %v1307 = vsel %vm1278, %v1210, 0
  %v1310 = vsel %vm1278, %v1211, 0
  %1312 = vmatprep.subr.mxu0 0.0
  %1313 = vmatpush1.msra.mxu0 %v1186
  %1314 = vmatprep.subr.mxu0 0.0
  %1315 = vmatpush1.msra.mxu0 %v1187
  %1316 = vmatprep.subr.mxu0 0.0
  %1317 = vmatpush1.msra.mxu0 %v1188
  %1318 = vmatprep.subr.mxu0 0.0
  %1319 = vmatpush1.msra.mxu0 %v1189
  %1320 = vmatprep.subr.mxu0 0.0
  %1321 = vmatpush1.msra.mxu0 %v1190
  %1322 = vmatprep.subr.mxu0 0.0
  %1323 = vmatpush1.msra.mxu0 %v1191
  %1324 = vmatprep.subr.mxu0 0.0
  %1325 = vmatpush1.msra.mxu0 %v1192
  %1326 = vmatprep.subr.mxu0 0.0
  %1327 = vmatpush1.msra.mxu0 %v1193
  %1328 = vmatprep.subr.mxu0 0.0
  %1329 = vmatpush1.msra.mxu0 %v1194
  %1330 = vmatprep.subr.mxu0 0.0
  %1331 = vmatpush1.msra.mxu0 %v1195
  %1332 = vmatprep.subr.mxu0 0.0
  %1333 = vmatpush1.msra.mxu0 %v1196
  %1334 = vmatprep.subr.mxu0 0.0
  %1335 = vmatpush1.msra.mxu0 %v1197
  %1336 = vmatprep.subr.mxu0 0.0
  %1337 = vmatpush1.msra.mxu0 %v1198
  %1338 = vmatprep.subr.mxu0 0.0
  %1339 = vmatpush1.msra.mxu0 %v1199
  %1340 = vmatprep.subr.mxu0 0.0
  %1341 = vmatpush1.msra.mxu0 %v1200
  %1342 = vmatprep.subr.mxu0 0.0
  %1343 = vmatpush1.msra.mxu0 0.0
  %1344 = vmatprep.subr.mxu0 0.0
  %1345 = vmatpush1.msra.mxu0 0.0
  %1346 = vmatprep.subr.mxu0 0.0
  %1347 = vmatpush1.msra.mxu0 0.0
  %1348 = vmatprep.subr.mxu0 0.0
  %1349 = vmatpush1.msra.mxu0 0.0
  %1350 = vmatprep.subr.mxu0 0.0
  %1351 = vmatpush1.msra.mxu0 0.0
  %1352 = vmatprep.subr.mxu0 0.0
  %1353 = vmatpush1.msra.mxu0 0.0
  %1354 = vmatprep.subr.mxu0 0.0
  %1355 = vmatpush1.msra.mxu0 0.0
  %1356 = vmatprep.subr.mxu0 0.0
  %1357 = vmatpush1.msra.mxu0 0.0
  %1358 = vmatprep.subr.mxu0 0.0
  %1359 = vmatpush1.msra.mxu0 0.0
  %1360 = vmatprep.subr.mxu0 0.0
  %1361 = vmatpush1.msra.mxu0 0.0
  %1362 = vmatprep.subr.mxu0 0.0
  %1363 = vmatpush1.msra.mxu0 0.0
  %1364 = vmatprep.subr.mxu0 0.0
  %1365 = vmatpush1.msra.mxu0 0.0
  %1366 = vmatprep.subr.mxu0 0.0
  %1367 = vmatpush1.msra.mxu0 0.0
  %1368 = vmatprep.subr.mxu0 0.0
  %1369 = vmatpush1.msra.mxu0 0.0
  %1370 = vmatprep.subr.mxu0 0.0
  %1371 = vmatpush1.msra.mxu0 0.0
  %1372 = vmatprep.subr.mxu0 0.0
  %1373 = vmatpush1.msra.mxu0 0.0
  %1374 = vmatprep.subr.mxu0 0.0
  %1375 = vmatpush1.msra.mxu0 0.0
  %1376 = vmatprep.mubr.f32.mxu0 0.0
  %1377 = vmatmul.mubr.f32.gmra.mrb[0].mxu0 %v1280
  %v1378 = vpop.f32.mrb[0].mxu0
  %v1379 = vadd.f32 %v1226, %v1378
  %v1380 = vpop.f32.mrb[0].mxu0
  %1381 = vmatprep.mubr.f32.mxu0 0.0
  %1382 = vmatmul.mubr.f32.gmra.mrb[0].mxu0 %v1283
  %v1383 = vpop.f32.mrb[0].mxu0
  %v1384 = vadd.f32 %v1231, %v1383
  %v1385 = vpop.f32.mrb[0].mxu0
  %1386 = vmatprep.mubr.f32.mxu0 0.0
  %1387 = vmatmul.mubr.f32.gmra.mrb[0].mxu0 %v1286
  %v1388 = vpop.f32.mrb[0].mxu0
  %v1389 = vadd.f32 %v1236, %v1388
  %v1390 = vpop.f32.mrb[0].mxu0
  %1391 = vmatprep.mubr.f32.mxu0 0.0
  %1392 = vmatmul.mubr.f32.gmra.mrb[0].mxu0 %v1289
  %v1393 = vpop.f32.mrb[0].mxu0
  %v1394 = vadd.f32 %v1241, %v1393
  %v1395 = vpop.f32.mrb[0].mxu0
  %1396 = vmatprep.mubr.f32.mxu0 0.0
  %1397 = vmatmul.mubr.f32.gmra.mrb[0].mxu0 %v1292
  %v1398 = vpop.f32.mrb[0].mxu0
  %v1399 = vadd.f32 %v1246, %v1398
  %v1400 = vpop.f32.mrb[0].mxu0
  %1401 = vmatprep.mubr.f32.mxu0 0.0
  %1402 = vmatmul.mubr.f32.gmra.mrb[0].mxu0 %v1295
  %v1403 = vpop.f32.mrb[0].mxu0
  %v1404 = vadd.f32 %v1251, %v1403
  %v1405 = vpop.f32.mrb[0].mxu0
  %1406 = vmatprep.mubr.f32.mxu0 0.0
  %1407 = vmatmul.mubr.f32.gmra.mrb[0].mxu0 %v1298
  %v1408 = vpop.f32.mrb[0].mxu0
  %v1409 = vadd.f32 %v1256, %v1408
  %v1410 = vpop.f32.mrb[0].mxu0
  %1411 = vmatprep.mubr.f32.mxu0 0.0
  %1412 = vmatmul.mubr.f32.gmra.mrb[0].mxu0 %v1301
  %v1413 = vpop.f32.mrb[0].mxu0
  %v1414 = vadd.f32 %v1261, %v1413
  %v1415 = vpop.f32.mrb[0].mxu0
  %1416 = vmatprep.mubr.f32.mxu0 0.0
  %1417 = vmatmul.mubr.f32.gmra.mrb[0].mxu0 %v1304
  %v1418 = vpop.f32.mrb[0].mxu0
  %v1419 = vadd.f32 %v1266, %v1418
  %v1420 = vpop.f32.mrb[0].mxu0
  %1421 = vmatprep.mubr.f32.mxu0 0.0
  %1422 = vmatmul.mubr.f32.gmra.mrb[0].mxu0 %v1307
  %v1423 = vpop.f32.mrb[0].mxu0
  %v1424 = vadd.f32 %v1271, %v1423
  %v1425 = vpop.f32.mrb[0].mxu0
  %1426 = vmatprep.mubr.f32.mxu0 0.0
  %1427 = vmatmul.mubr.f32.gmra.mrb[0].mxu0 %v1310
  %v1428 = vpop.f32.mrb[0].mxu0
  %v1429 = vadd.f32 %v1276, %v1428
  %v1430 = vpop.f32.mrb[0].mxu0
  %1431 = vdwg.mxu0
  %v1432 = vmax.f32 %v1379, 0.0
  %v1433 = vmax.f32 %v1384, 0.0
  %v1434 = vmax.f32 %v1389, 0.0
  %v1435 = vmax.f32 %v1394, 0.0
  %v1436 = vmax.f32 %v1399, 0.0
  %v1437 = vmax.f32 %v1404, 0.0
  %v1438 = vmax.f32 %v1409, 0.0
  %v1439 = vmax.f32 %v1414, 0.0
  %v1440 = vmax.f32 %v1419, 0.0
  %v1441 = vmax.f32 %v1424, 0.0
  %v1442 = vmax.f32 %v1429, 0.0
  %v1443 = vld [vmem:[%s10] sm:$0xff]
  %v1444 = vld [vmem:[%s10 + $0x8] sm:$0x3]
  %v1445 = vld [vmem:[%s11] sm:$0xff]
  %v1446 = vld [vmem:[%s11 + $0x8] sm:$0x3]
  %1448 = vset.pattern.permute.xlu0 0
  %1449 = vperm.xlu0 %1448, %v1445
  %v1450 = vpop.permute.xlu0 %1449
  %1453 = vset.pattern.permute.xlu0 0
  %1454 = vperm.xlu0 %1453, %v1446
  %v1455 = vpop.permute.xlu0 %1454
  %vm1457 = vcmask 687104
  %v1459 = vsel %vm1457, %v1443, 0
  %v1462 = vsel %vm1457, %v1444, 0
  %vm1464 = vcmask 1043456
  %v1466 = vsel %vm1464, %v1442, 0
  %1468 = vmatprep.subr.mxu0 0.0
  %1469 = vmatpush1.msra.mxu0 %v1432
  %1470 = vmatprep.subr.mxu0 0.0
  %1471 = vmatpush1.msra.mxu0 %v1433
  %1472 = vmatprep.subr.mxu0 0.0
  %1473 = vmatpush1.msra.mxu0 %v1434
  %1474 = vmatprep.subr.mxu0 0.0
  %1475 = vmatpush1.msra.mxu0 %v1435
  %1476 = vmatprep.subr.mxu0 0.0
  %1477 = vmatpush1.msra.mxu0 %v1436
  %1478 = vmatprep.subr.mxu0 0.0
  %1479 = vmatpush1.msra.mxu0 %v1437
  %1480 = vmatprep.subr.mxu0 0.0
  %1481 = vmatpush1.msra.mxu0 %v1438
  %1482 = vmatprep.subr.mxu0 0.0
  %1483 = vmatpush1.msra.mxu0 %v1439
  %1484 = vmatprep.subr.mxu0 0.0
  %1485 = vmatpush1.msra.mxu0 %v1440
  %1486 = vmatprep.subr.mxu0 0.0
  %1487 = vmatpush1.msra.mxu0 %v1441
  %1488 = vmatprep.subr.mxu0 0.0
  %1489 = vmatpush1.msra.mxu0 %v1466
  %1490 = vmatprep.subr.mxu0 0.0
  %1491 = vmatpush1.msra.mxu0 0.0
  %1492 = vmatprep.subr.mxu0 0.0
  %1493 = vmatpush1.msra.mxu0 0.0
  %1494 = vmatprep.subr.mxu0 0.0
  %1495 = vmatpush1.msra.mxu0 0.0
  %1496 = vmatprep.subr.mxu0 0.0
  %1497 = vmatpush1.msra.mxu0 0.0
  %1498 = vmatprep.subr.mxu0 0.0
  %1499 = vmatpush1.msra.mxu0 0.0
  %1500 = vmatprep.subr.mxu0 0.0
  %1501 = vmatpush1.msra.mxu0 0.0
  %1502 = vmatprep.subr.mxu0 0.0
  %1503 = vmatpush1.msra.mxu0 0.0
  %1504 = vmatprep.subr.mxu0 0.0
  %1505 = vmatpush1.msra.mxu0 0.0
  %1506 = vmatprep.subr.mxu0 0.0
  %1507 = vmatpush1.msra.mxu0 0.0
  %1508 = vmatprep.subr.mxu0 0.0
  %1509 = vmatpush1.msra.mxu0 0.0
  %1510 = vmatprep.subr.mxu0 0.0
  %1511 = vmatpush1.msra.mxu0 0.0
  %1512 = vmatprep.subr.mxu0 0.0
  %1513 = vmatpush1.msra.mxu0 0.0
  %1514 = vmatprep.subr.mxu0 0.0
  %1515 = vmatpush1.msra.mxu0 0.0
  %1516 = vmatprep.subr.mxu0 0.0
  %1517 = vmatpush1.msra.mxu0 0.0
  %1518 = vmatprep.subr.mxu0 0.0
  %1519 = vmatpush1.msra.mxu0 0.0
  %1520 = vmatprep.subr.mxu0 0.0
  %1521 = vmatpush1.msra.mxu0 0.0
  %1522 = vmatprep.subr.mxu0 0.0
  %1523 = vmatpush1.msra.mxu0 0.0
  %1524 = vmatprep.subr.mxu0 0.0
  %1525 = vmatpush1.msra.mxu0 0.0
  %1526 = vmatprep.subr.mxu0 0.0
  %1527 = vmatpush1.msra.mxu0 0.0
  %1528 = vmatprep.subr.mxu0 0.0
  %1529 = vmatpush1.msra.mxu0 0.0
  %1530 = vmatprep.subr.mxu0 0.0
  %1531 = vmatpush1.msra.mxu0 0.0
  %1532 = vmatprep.mubr.f32.mxu0 0.0
  %1533 = vmatmul.mubr.f32.gmra.mrb[0].mxu0 %v1459
  %v1534 = vpop.f32.mrb[0].mxu0
  %v1535 = vadd.f32 %v1450, %v1534
  %v1536 = vpop.f32.mrb[0].mxu0
  %1537 = vmatprep.mubr.f32.mxu0 0.0
  %1538 = vmatmul.mubr.f32.gmra.mrb[0].mxu0 %v1462
  %v1539 = vpop.f32.mrb[0].mxu0
  %v1540 = vadd.f32 %v1455, %v1539
  %v1541 = vpop.f32.mrb[0].mxu0
  %1542 = vdwg.mxu0
  %1543 = vst.msk [vmem:[%s12] sm:$0xff] %vm463, %v1535
  %vm1544 = vcmask 9216
  %1545 = vst.msk [vmem:[%s12 + $0x8] sm:$0x3] %vm1544, %v1540
  // Predicated region
  $region50: #{net_forward.3} parent=0 // pred_check
    _
  $region51: #{net_forward.3} parent=0 // pred_check_branch
    %1547 = sbr.rel (0) target = $region53
  $region52: #{net_forward.3} parent=0 // pred_region
    _
  $region53: #{net_forward.3} parent=0 // pred_fallthru
    _
  // Predicated region
  $region54: #{net_forward.3} parent=0 // pred_check
    _
  $region55: #{net_forward.3} parent=0 // pred_check_branch
    %1549 = sbr.rel (0) target = $region57
  $region56: #{net_forward.3} parent=0 // pred_region
    _
  $region57: #{net_forward.3} parent=0 // pred_fallthru
    _

</llo_original>
